<compile_context>
chip_gen: v7x
topology: tpu7x:2x2x1
jax: 0.10.0
libtpu: 0.0.40
codegen_flags: <defaults>
</compile_context>

<pallas_src>
import functools

import jax
import jax.numpy as jnp
from jax import lax
from jax.experimental import pallas as pl
from jax.experimental.pallas import tpu as pltpu


# ------------------------------- kernel -------------------------------------

def _attention_kernel(v_ref, q_ref, w1v_ref, w1q_ref, b1_ref, w2_ref, out_ref,
                      *, cb):
    # v_ref  : (TB, K, Vd)  caller dtype (f32/bf16), cast to bf16 in-kernel
    # q_ref  : (TB, 1, Qd)  caller dtype
    # w1v_ref: (Vd, H) bf16     w1q_ref: (Qd, H) bf16
    # b1_ref : (1, H)  f32      w2_ref : (1, H)  f32
    # out_ref: (TB, 1, K) f32
    TB, K, Vd = v_ref.shape
    H = w1v_ref.shape[-1]
    Qd = q_ref.shape[-1]
    n_chunks = TB // cb          # wrapper guarantees cb divides TB

    def chunk_body(c, carry):
        b0 = c * cb

        # q-term with b1 folded in before it is broadcast over K  -> (cb, H)
        q2 = q_ref[pl.ds(b0, cb)].reshape(cb, Qd).astype(jnp.bfloat16)
        hqb = jnp.dot(q2, w1q_ref[...],
                      preferred_element_type=jnp.float32) + b1_ref[...]

        # v-term: bf16 cast right before the MXU (f32 never re-crosses HBM)
        v2 = v_ref[pl.ds(b0, cb)].reshape(cb * K, Vd).astype(jnp.bfloat16)
        hv = jnp.dot(v2, w1v_ref[...],
                     preferred_element_type=jnp.float32)          # (cb*K, H)

        # nonlinear: ReLU(concat(v, q_tiled) @ W1^T + b1), concat-free
        h = jnp.maximum(hv.reshape(cb, K, H) + hqb[:, None, :], 0.0)

        # linear(num_hid -> 1) as a lane reduction (avoids a width-1 matmul).
        # b2 is dropped: adding a constant to logits is a softmax-over-K no-op.
        logits = jnp.sum(h * w2_ref[...], axis=-1)                # (cb, K)

        # exact softmax over K (PyTorch dim=1); exact divide so rows sum to 1
        m = jnp.max(logits, axis=-1, keepdims=True)
        e = jnp.exp(logits - m)
        s = jnp.sum(e, axis=-1, keepdims=True)
        out_ref[pl.ds(b0, cb)] = (e / s)[:, None, :]              # (cb, 1, K)
        return carry

    if n_chunks == 1:
        chunk_body(0, 0)
    else:
        lax.fori_loop(0, n_chunks, chunk_body, 0, unroll=(n_chunks <= 8))


# ----------------------------- tile selection --------------------------------

def _vmem_capacity_bytes():
    try:
        info = pltpu.get_tpu_info()
        cap = getattr(info, "vmem_capacity_bytes", None)
        if cap:
            return int(cap)
    except Exception:
        pass
    return 64 * 1024 * 1024            # conservative fallback (v7x per-TC VMEM)


def _pick_tiles(B, K, Vd, Qd, H, v_itemsize, batch_tile=None):
    """Generation-aware batch tile (tb), in-kernel row chunk (cb), vmem limit."""
    cap = _vmem_capacity_bytes()
    budget = (cap * 3) // 8            # ~48 MiB on 128-MiB parts, ~24 MiB on v7x
    vmem_limit = (cap * 3) // 4        # ~96 MiB / ~48 MiB  (>=2x headroom)

    # in-kernel chunk: keep the live f32 (cb*K, H) block around <=1024 rows
    cb = max(1, min(B, 1024 // max(K, 1)))

    # VMEM that does not scale with the batch tile: weights + chunk temporaries
    fixed = (2 * (Vd + Qd) * H * 2         # double-buffered bf16 W1 halves
             + 2 * 2 * H * 4               # b1, w2 (f32)
             + cb * K * Vd * 2             # bf16 chunk of v
             + 2 * cb * K * H * 4          # hv and h live together (f32)
             + 4 * cb * K * 4)             # logits / softmax temporaries
    # VMEM per batch row of the tile (double-buffered pipeline buffers)
    per_batch = (2 * K * Vd * v_itemsize   # v tile (caller dtype, cast in-kernel)
                 + 2 * Qd * v_itemsize     # q tile
                 + 2 * K * 4)              # f32 output tile

    if batch_tile is None:
        avail = max(budget - fixed, per_batch)
        tb = max(1, min(B, int(avail // per_batch)))
        if B >= 2:
            tb = min(tb, pl.cdiv(B, 2))    # keep >=2 grid steps (megacore work)
            # prefer an even number of grid steps (v7x: 2 TCs share the axis)
            for cand in range(tb, 0, -1):
                if pl.cdiv(B, cand) % 2 == 0:
                    tb = cand
                    break
    else:
        tb = int(max(1, min(batch_tile, B)))

    # tb must be a multiple of the in-kernel chunk size
    cb = min(cb, tb)
    tb = max(cb, (tb // cb) * cb)
    return tb, cb, int(vmem_limit)


# ------------------------------- wrapper -------------------------------------

def attention(v, q, w1v, w1q, b1, w2, *, batch_tile=None):
    """v: [B, K, Vd], q: [B, Qd] -> softmax-over-K attention weights [B, K, 1]."""
    B, K, Vd = v.shape
    Qd = q.shape[-1]
    H = w1v.shape[-1]

    # v / q stay in the caller's dtype (no wrapper-side bf16 convert: that would
    # roughly triple the HBM traffic of the dominant v stream).  The bf16 cast
    # for the MXU happens inside the kernel right before the dot.
    q3 = q.reshape(B, 1, Qd)

    # Weights are tiny -> one-time wrapper cast halves their per-step DMA.
    w1vb = w1v.astype(jnp.bfloat16)
    w1qb = w1q.astype(jnp.bfloat16)
    b1r = b1.reshape(1, H).astype(jnp.float32)
    w2r = w2.reshape(1, H).astype(jnp.float32)

    tb, cb, vmem_limit = _pick_tiles(B, K, Vd, Qd, H,
                                     jnp.dtype(v.dtype).itemsize, batch_tile)
    kernel = functools.partial(_attention_kernel, cb=cb)

    # TODO(synk): for very large K the softmax axis would need a two-pass /
    # online-softmax K tiling; here K lives entirely inside one block.
    out = pl.pallas_call(
        kernel,
        out_shape=jax.ShapeDtypeStruct((B, 1, K), jnp.float32),
        grid=(pl.cdiv(B, tb),),
        in_specs=[
            pl.BlockSpec((tb, K, Vd), lambda i: (i, 0, 0)),
            pl.BlockSpec((tb, 1, Qd), lambda i: (i, 0, 0)),
            pl.BlockSpec((Vd, H), lambda i: (0, 0)),
            pl.BlockSpec((Qd, H), lambda i: (0, 0)),
            pl.BlockSpec((1, H), lambda i: (0, 0)),
            pl.BlockSpec((1, H), lambda i: (0, 0)),
        ],
        out_specs=pl.BlockSpec((tb, 1, K), lambda i: (i, 0, 0)),
        compiler_params=pltpu.CompilerParams(
            dimension_semantics=("parallel",),
            vmem_limit_bytes=vmem_limit),
    )(v, q3, w1vb, w1qb, b1r, w2r)

    # (B,1,K) -> (B,K,1): tiny relayout (B*K*4 bytes) kept only to honour the
    # module's [batch, k, 1] output contract.
    return out.reshape(B, K, 1)


# ----------------------------- references ------------------------------------

def weight_norm_effective(w_raw, g):
    # torch weight_norm(dim=None): W = g * V / ||V||_F  (scalar g, Frobenius norm)
    return g * w_raw / jnp.sqrt(jnp.sum(w_raw * w_raw))


def ref_forward_f32(v, q, W1, b1, W2, b2):
    # pure-JAX f32 mirror of the PyTorch forward (including b2)
    B, K, _ = v.shape
    qt = jnp.broadcast_to(q[:, None, :], (B, K, q.shape[-1]))
    vq = jnp.concatenate([v, qt], axis=-1)
    h = jax.nn.relu(vq @ W1.T + b1)
    logits = h @ W2.T + b2                       # (B, K, 1)
    return jax.nn.softmax(logits, axis=1)


def ref_forward_bf16(v, q, w1v, w1q, b1, w2):
    # mirror of the kernel math path (bf16 matmuls, f32 accumulation, b2-free)
    B, K, Vd = v.shape
    H = w1v.shape[-1]
    hv = jnp.dot(v.astype(jnp.bfloat16).reshape(B * K, Vd),
                 w1v.astype(jnp.bfloat16),
                 preferred_element_type=jnp.float32).reshape(B, K, H)
    hq = jnp.dot(q.astype(jnp.bfloat16), w1q.astype(jnp.bfloat16),
                 preferred_element_type=jnp.float32) + b1
    h = jax.nn.relu(hv + hq[:, None, :])
    logits = jnp.sum(h * w2, axis=-1)            # (B, K)
    return jax.nn.softmax(logits, axis=-1)[..., None]


if __name__ == "__main__":
    # Small but lane-aligned dims.  B=8 gives an even number (2) of grid steps.
    B, K = 8, 128              # batch, num_objs (softmax axis)
    Vd, Qd, H = 128, 128, 128  # v_dim, q_dim, num_hid

    key = jax.random.PRNGKey(0)
    kv, kq, kw1, kg1, kb1, kw2, kg2, kb2 = jax.random.split(key, 8)

    v = jax.random.normal(kv, (B, K, Vd), dtype=jnp.float32)
    q = jax.random.normal(kq, (B, Qd), dtype=jnp.float32)

    # weight_norm parameters (dim=None): raw direction V + scalar gain g
    W1_raw = jax.random.normal(kw1, (H, Vd + Qd), dtype=jnp.float32) * 0.1
    g1 = jax.random.uniform(kg1, (), dtype=jnp.float32) + 1.0
    b1 = jax.random.normal(kb1, (H,), dtype=jnp.float32) * 0.1

    W2_raw = jax.random.normal(kw2, (1, H), dtype=jnp.float32) * 0.1
    g2 = jax.random.uniform(kg2, (), dtype=jnp.float32) + 1.0
    b2 = jax.random.normal(kb2, (1,), dtype=jnp.float32) * 0.1

    W1 = weight_norm_effective(W1_raw, g1)       # (H, Vd+Qd)
    W2 = weight_norm_effective(W2_raw, g2)       # (1, H)

    # Split W1 for the concat-free matmul; transpose to [in, out].
    w1v = W1[:, :Vd].T                           # (Vd, H)
    w1q = W1[:, Vd:].T                           # (Qd, H)
    w2 = W2[0]                                   # (H,)

    out = attention(v, q, w1v, w1q, b1, w2)
    out = jax.block_until_ready(out)
    assert out.shape == (B, K, 1)

    # 1) tight check vs. a JAX mirror of the kernel math (bf16 matmuls, f32 rest)
    ref_b = ref_forward_bf16(v, q, w1v, w1q, b1, w2)
    assert jnp.allclose(out, ref_b, atol=2e-3, rtol=1e-2), "mismatch vs bf16 mirror"

    # 2) semantics check vs. the f32 PyTorch-equivalent forward (including b2)
    ref_f = ref_forward_f32(v, q, W1, b1, W2, b2)
    assert jnp.allclose(out, ref_f, atol=5e-3, rtol=5e-2), "mismatch vs f32 reference"

    # attention weights sum to 1 over the K axis (exact softmax divide now)
    assert jnp.allclose(jnp.sum(out[..., 0], axis=1), 1.0, atol=1e-3)

    print("KERNEL_OK")
</pallas_src>

<mosaic_0001>
module attributes {stable_mosaic.version = 11 : i64} {
  func.func @_attention_kernel(%arg0: i32, %arg1: memref<4x128x128xf32, #tpu.memory_space<vmem>>, %arg2: memref<4x1x128xf32, #tpu.memory_space<vmem>>, %arg3: memref<128x128xbf16, #tpu.memory_space<vmem>>, %arg4: memref<128x128xbf16, #tpu.memory_space<vmem>>, %arg5: memref<1x128xf32, #tpu.memory_space<vmem>>, %arg6: memref<1x128xf32, #tpu.memory_space<vmem>>, %arg7: memref<4x1x128xf32, #tpu.memory_space<vmem>>) attributes {dimension_semantics = [#tpu.dimension_semantics<parallel>], iteration_bounds = array<i64: 2>, scalar_prefetch = 0 : i64, scratch_operands = 0 : i64, tpu.core_type = #tpu.core_type<tc>, window_params = [{transform_indices = @transform_0, window_bounds = array<i64: 4, 128, 128>}, {transform_indices = @transform_1, window_bounds = array<i64: 4, 1, 128>}, {pipeline_mode = #tpu.pipeline_mode<synchronous>, transform_indices = @transform_2, window_bounds = array<i64: 128, 128>}, {pipeline_mode = #tpu.pipeline_mode<synchronous>, transform_indices = @transform_3, window_bounds = array<i64: 128, 128>}, {pipeline_mode = #tpu.pipeline_mode<synchronous>, transform_indices = @transform_4, window_bounds = array<i64: 1, 128>}, {pipeline_mode = #tpu.pipeline_mode<synchronous>, transform_indices = @transform_5, window_bounds = array<i64: 1, 128>}, {transform_indices = @transform_6, window_bounds = array<i64: 4, 1, 128>}]} {
    %c0 = arith.constant 0 : index
    %c0_0 = arith.constant 0 : index
    %c0_1 = arith.constant 0 : index
    %0 = vector.load %arg2[%c0, %c0_0, %c0_1] : memref<4x1x128xf32, #tpu.memory_space<vmem>>, vector<4x1x128xf32>
    %1 = vector.shape_cast %0 : vector<4x1x128xf32> to vector<4x128xf32>
    %2 = arith.truncf %1 : vector<4x128xf32> to vector<4x128xbf16>
    %c0_2 = arith.constant 0 : index
    %c0_3 = arith.constant 0 : index
    %3 = vector.load %arg4[%c0_2, %c0_3] : memref<128x128xbf16, #tpu.memory_space<vmem>>, vector<128x128xbf16>
    %cst = arith.constant dense<0.000000e+00> : vector<4x128xf32>
    %4 = tpu.matmul %2, %3, %cst {dimension_numbers = #tpu.dot_dimension_numbers<[1], [0], [0], [1], [0, 0, 1, 1], [], []>} : vector<4x128xbf16>, vector<128x128xbf16>, vector<4x128xf32> -> vector<4x128xf32>
    %c0_4 = arith.constant 0 : index
    %c0_5 = arith.constant 0 : index
    %5 = vector.load %arg5[%c0_4, %c0_5] : memref<1x128xf32, #tpu.memory_space<vmem>>, vector<1x128xf32>
    %6 = vector.broadcast %5 : vector<1x128xf32> to vector<4x128xf32>
    %7 = arith.addf %4, %6 : vector<4x128xf32>
    %c0_6 = arith.constant 0 : index
    %c0_7 = arith.constant 0 : index
    %c0_8 = arith.constant 0 : index
    %8 = vector.load %arg1[%c0_6, %c0_7, %c0_8] : memref<4x128x128xf32, #tpu.memory_space<vmem>>, vector<4x128x128xf32>
    %9 = vector.shape_cast %8 : vector<4x128x128xf32> to vector<512x128xf32>
    %10 = arith.truncf %9 : vector<512x128xf32> to vector<512x128xbf16>
    %c0_9 = arith.constant 0 : index
    %c0_10 = arith.constant 0 : index
    %11 = vector.load %arg3[%c0_9, %c0_10] : memref<128x128xbf16, #tpu.memory_space<vmem>>, vector<128x128xbf16>
    %cst_11 = arith.constant dense<0.000000e+00> : vector<512x128xf32>
    %12 = tpu.matmul %10, %11, %cst_11 {dimension_numbers = #tpu.dot_dimension_numbers<[1], [0], [0], [1], [0, 0, 1, 1], [], []>} : vector<512x128xbf16>, vector<128x128xbf16>, vector<512x128xf32> -> vector<512x128xf32>
    %13 = vector.shape_cast %12 : vector<512x128xf32> to vector<4x128x128xf32>
    %14 = vector.shape_cast %7 : vector<4x128xf32> to vector<4x1x128xf32>
    %15 = vector.broadcast %14 : vector<4x1x128xf32> to vector<4x128x128xf32>
    %16 = arith.addf %13, %15 : vector<4x128x128xf32>
    %cst_12 = arith.constant 0.000000e+00 : f32
    %17 = vector.broadcast %cst_12 : f32 to vector<4x128x128xf32>
    %18 = arith.maximumf %16, %17 : vector<4x128x128xf32>
    %c0_13 = arith.constant 0 : index
    %c0_14 = arith.constant 0 : index
    %19 = vector.load %arg6[%c0_13, %c0_14] : memref<1x128xf32, #tpu.memory_space<vmem>>, vector<1x128xf32>
    %20 = vector.shape_cast %19 : vector<1x128xf32> to vector<1x1x128xf32>
    %21 = vector.broadcast %20 : vector<1x1x128xf32> to vector<4x128x128xf32>
    %22 = arith.mulf %18, %21 : vector<4x128x128xf32>
    %cst_15 = arith.constant dense<0.000000e+00> : vector<4x128xf32>
    %23 = vector.multi_reduction <add>, %22, %cst_15 [2] : vector<4x128x128xf32> to vector<4x128xf32>
    %cst_16 = arith.constant dense<0xFF800000> : vector<4xf32>
    %24 = vector.multi_reduction <maximumf>, %23, %cst_16 [1] : vector<4x128xf32> to vector<4xf32>
    %25 = vector.shape_cast %24 : vector<4xf32> to vector<4x1xf32>
    %26 = vector.broadcast %25 : vector<4x1xf32> to vector<4x128xf32>
    %27 = arith.subf %23, %26 : vector<4x128xf32>
    %28 = math.exp %27 : vector<4x128xf32>
    %cst_17 = arith.constant dense<0.000000e+00> : vector<4xf32>
    %29 = vector.multi_reduction <add>, %28, %cst_17 [1] : vector<4x128xf32> to vector<4xf32>
    %30 = vector.shape_cast %29 : vector<4xf32> to vector<4x1xf32>
    %31 = vector.broadcast %30 : vector<4x1xf32> to vector<4x128xf32>
    %32 = arith.divf %28, %31 : vector<4x128xf32>
    %33 = vector.shape_cast %32 : vector<4x128xf32> to vector<4x1x128xf32>
    %c0_18 = arith.constant 0 : index
    %c0_19 = arith.constant 0 : index
    %c0_20 = arith.constant 0 : index
    %34 = vector.load %arg7[%c0_18, %c0_19, %c0_20] : memref<4x1x128xf32, #tpu.memory_space<vmem>>, vector<4x1x128xf32>
    tpu.vector_store %arg7[%c0_18, %c0_19, %c0_20], %33 {strides = array<i32>} : memref<4x1x128xf32, #tpu.memory_space<vmem>>, vector<4x1x128xf32>,
    return
  }
  func.func @transform_0(%arg0: i32) -> (i32, i32, i32) {
    %c0_i32 = arith.constant 0 : i32
    %c0_i32_0 = arith.constant 0 : i32
    %c0_i32_1 = arith.constant 0 : i32
    return %arg0, %c0_i32, %c0_i32_0 : i32, i32, i32
  }
  func.func @transform_1(%arg0: i32) -> (i32, i32, i32) {
    %c0_i32 = arith.constant 0 : i32
    %c0_i32_0 = arith.constant 0 : i32
    %c0_i32_1 = arith.constant 0 : i32
    return %arg0, %c0_i32, %c0_i32_0 : i32, i32, i32
  }
  func.func @transform_2(%arg0: i32) -> (i32, i32) {
    %c0_i32 = arith.constant 0 : i32
    %c0_i32_0 = arith.constant 0 : i32
    %c0_i32_1 = arith.constant 0 : i32
    return %c0_i32, %c0_i32_0 : i32, i32
  }
  func.func @transform_3(%arg0: i32) -> (i32, i32) {
    %c0_i32 = arith.constant 0 : i32
    %c0_i32_0 = arith.constant 0 : i32
    %c0_i32_1 = arith.constant 0 : i32
    return %c0_i32, %c0_i32_0 : i32, i32
  }
  func.func @transform_4(%arg0: i32) -> (i32, i32) {
    %c0_i32 = arith.constant 0 : i32
    %c0_i32_0 = arith.constant 0 : i32
    %c0_i32_1 = arith.constant 0 : i32
    return %c0_i32, %c0_i32_0 : i32, i32
  }
  func.func @transform_5(%arg0: i32) -> (i32, i32) {
    %c0_i32 = arith.constant 0 : i32
    %c0_i32_0 = arith.constant 0 : i32
    %c0_i32_1 = arith.constant 0 : i32
    return %c0_i32, %c0_i32_0 : i32, i32
  }
  func.func @transform_6(%arg0: i32) -> (i32, i32, i32) {
    %c0_i32 = arith.constant 0 : i32
    %c0_i32_0 = arith.constant 0 : i32
    %c0_i32_1 = arith.constant 0 : i32
    return %arg0, %c0_i32, %c0_i32_0 : i32, i32, i32
  }
}

</mosaic_0001>

<llo_original>
// kernel: tpu_custom_call.1
$region0: #{tpu_custom_call.1}
  #allocation0 [shape = 'u32[]', space=smem, size = 0x4, offset = 0x4, fixed_abs, tag = 'smem constant byte address 0x4 - core index']
  #allocation1 [shape = 'u32[144,128]{1,0:T(1,128)}', space=vmem, size = 0x12000, scoped, tag = 'internal scratch']
  %s0 = inlined_call_operand.hbm [shape: f32[8,128,128], index: 0, kind: input, shape index: {}]
  %s1 = inlined_call_operand.hbm [shape: f32[8,1,128], index: 1, kind: input, shape index: {}]
  %s2 = inlined_call_operand.hbm [shape: bf16[128,128], index: 2, kind: input, shape index: {}]
  %s3 = inlined_call_operand.hbm [shape: bf16[128,128], index: 3, kind: input, shape index: {}]
  %s4 = inlined_call_operand.vmem [shape: f32[1,128], index: 4, kind: input, shape index: {}]
  %s5 = inlined_call_operand.vmem [shape: f32[1,128], index: 5, kind: input, shape index: {}]
  %s6 = inlined_call_operand.hbm [shape: f32[8,1,128], index: 6, kind: output, shape index: {}]
  %s7 = sld [smem:[#allocation0]]
  $region73: #{tpu_custom_call.1} parent=0
    _
  %s9 = ssub.s32 1, %s7
  %s10 = scalar_select 0, %s9, %s7
  $region1: #{tpu_custom_call.1} parent=0
    #allocation2 [shape = 'u8[524288]{0}', space=vmem, size = 0x80000, scoped, tag = 'input window, operand 0']
    #allocation3 [shape = 's32[2]{0}', space=sflag, size = 0x8, scoped, tag = 'scoped memory for tpu_custom_call.1']
    #allocation4 [shape = 's32[2]{0}', space=sflag, size = 0x8, scoped, tag = 'scoped memory for tpu_custom_call.1']
    #allocation5 [shape = 'u8[4096]{0}', space=vmem, size = 0x1000, scoped, tag = 'input window, operand 1']
    #allocation6 [shape = 's32[2]{0}', space=sflag, size = 0x8, scoped, tag = 'scoped memory for tpu_custom_call.1']
    #allocation7 [shape = 'u8[32768]{0}', space=vmem, size = 0x8000, scoped, tag = 'input window, operand 2, single buffered']
    #allocation8 [shape = 'u8[32768]{0}', space=vmem, size = 0x8000, scoped, tag = 'input window, operand 3, single buffered']
    #allocation9 [shape = 's32[1]{0}', space=sflag, size = 0x4, scoped, tag = 'scoped memory for tpu_custom_call.1']
    #allocation10 [shape = 'u8[4096]{0}', space=vmem, size = 0x1000, scoped, tag = 'output window, operand 0']
    %11 = vsyncpa [#allocation3], 0
    %s12 = scalar_lea.sflag [#allocation3], 1
    %13 = vsyncpa %s12, 0
    %14 = vsyncpa [#allocation6], 0
    %s15 = scalar_lea.sflag [#allocation6], 1
    %16 = vsyncpa %s15, 0
    %17 = vsyncpa [#allocation9], 0
    %18 = vsyncpa [#allocation4], 0
    %s19 = scalar_lea.sflag [#allocation4], 1
    %20 = vsyncpa %s19, 0
    loop: start=0, step=1, limit=4
    $region2: #{tpu_custom_call.1} parent=1 // loop_pre_header
      _
    $region3: #{tpu_custom_call.1} parent=1 // loop_header
      %s22 = sphi 0, %s26
      %p23 = scmp.ge.s32.totalorder %s22, 4
      %s32 = sphi 0, %s34
      %s35 = sphi 0, %s32
      %s36 = sphi 0, %s35
      %s52 = sphi 0, %s36
      %s58 = sphi 0, %s60
      %s61 = sphi 0, %s58
      %s62 = sphi 0, %s61
      %s78 = sphi 0, %s62
      %s82 = sphi 0, %s82
      %s84 = sphi 0, %s82
      %s85 = sphi 0, %s84
      %s99 = sphi 0, %s85
      %s103 = sphi 0, %s103
      %s105 = sphi 0, %s103
      %s106 = sphi 0, %s105
      %s120 = sphi 0, %s106
      %s124 = sphi 0, %s124
      %s126 = sphi 0, %s124
      %s127 = sphi 0, %s126
      %s141 = sphi 0, %s127
      %s145 = sphi 0, %s145
      %s147 = sphi 0, %s145
      %s148 = sphi 0, %s147
      %s162 = sphi 0, %s148
      %s168 = sphi 0, %s170
      %s171 = sphi 0, %s168
      %s172 = sphi 0, %s171
      %s188 = sphi 0, %s172
    $region4: #{tpu_custom_call.1} parent=1 // loop_header_branch
      %25 = sbr.rel (%p23) target = $region8
    $region5: #{tpu_custom_call.1} parent=1 // loop_body
      %s27 = ssub.s32 %s22, 1
      %s28 = ssub.s32 %s22, 2
      %s29 = sadd.s32 %s22, 1
      %s30 = ssub.s32 %s22, %s29
      %p31 = scmp.eq.s32.totalorder %s30, 0
      %s33 = sadd.s32 %s32, 1
      %s34 = scalar_select %p31, %s32, %s33
      %p37 = pneg %p31
      %p38 = scmp.eq.s32.totalorder %s22, 1
      %p39 = por %p37, %p38
      %p40 = scmp.ne.s32.totalorder %s32, %s35
      %p41 = scmp.eq.s32.totalorder %s22, 0
      %p42 = por %p40, %p41
      %p43 = scmp.ne.s32.totalorder %s32, %s35
      %p44 = scmp.eq.s32.totalorder %s27, 1
      %p45 = por %p43, %p44
      %p46 = scmp.ne.s32.totalorder %s35, %s36
      %p47 = scmp.eq.s32.totalorder %s27, 0
      %p48 = por %p46, %p47
      %p49 = scmp.ne.s32.totalorder %s35, %s36
      %p50 = scmp.eq.s32.totalorder %s28, 1
      %p51 = por %p49, %p50
      %p53 = scmp.ne.s32.totalorder %s36, %s52
      %p54 = scmp.eq.s32.totalorder %s28, 0
      %p55 = por %p53, %p54
      %s56 = ssub.s32 %s22, %s29
      %p57 = scmp.eq.s32.totalorder %s56, 0
      %s59 = sadd.s32 %s58, 1
      %s60 = scalar_select %p57, %s58, %s59
      %p63 = pneg %p57
      %p64 = scmp.eq.s32.totalorder %s22, 1
      %p65 = por %p63, %p64
      %p66 = scmp.ne.s32.totalorder %s58, %s61
      %p67 = scmp.eq.s32.totalorder %s22, 0
      %p68 = por %p66, %p67
      %p69 = scmp.ne.s32.totalorder %s58, %s61
      %p70 = scmp.eq.s32.totalorder %s27, 1
      %p71 = por %p69, %p70
      %p72 = scmp.ne.s32.totalorder %s61, %s62
      %p73 = scmp.eq.s32.totalorder %s27, 0
      %p74 = por %p72, %p73
      %p75 = scmp.ne.s32.totalorder %s61, %s62
      %p76 = scmp.eq.s32.totalorder %s28, 1
      %p77 = por %p75, %p76
      %p79 = scmp.ne.s32.totalorder %s62, %s78
      %p80 = scmp.eq.s32.totalorder %s28, 0
      %p81 = por %p79, %p80
      %s83 = sadd.s32 %s82, 1
      %p86 = scmp.eq.s32.totalorder %s22, 1
      %p87 = scmp.ne.s32.totalorder %s82, %s84
      %p88 = scmp.eq.s32.totalorder %s22, 0
      %p89 = por %p87, %p88
      %p90 = scmp.ne.s32.totalorder %s82, %s84
      %p91 = scmp.eq.s32.totalorder %s27, 1
      %p92 = por %p90, %p91
      %p93 = scmp.ne.s32.totalorder %s84, %s85
      %p94 = scmp.eq.s32.totalorder %s27, 0
      %p95 = por %p93, %p94
      %p96 = scmp.ne.s32.totalorder %s84, %s85
      %p97 = scmp.eq.s32.totalorder %s28, 1
      %p98 = por %p96, %p97
      %p100 = scmp.ne.s32.totalorder %s85, %s99
      %p101 = scmp.eq.s32.totalorder %s28, 0
      %p102 = por %p100, %p101
      %s104 = sadd.s32 %s103, 1
      %p107 = scmp.eq.s32.totalorder %s22, 1
      %p108 = scmp.ne.s32.totalorder %s103, %s105
      %p109 = scmp.eq.s32.totalorder %s22, 0
      %p110 = por %p108, %p109
      %p111 = scmp.ne.s32.totalorder %s103, %s105
      %p112 = scmp.eq.s32.totalorder %s27, 1
      %p113 = por %p111, %p112
      %p114 = scmp.ne.s32.totalorder %s105, %s106
      %p115 = scmp.eq.s32.totalorder %s27, 0
      %p116 = por %p114, %p115
      %p117 = scmp.ne.s32.totalorder %s105, %s106
      %p118 = scmp.eq.s32.totalorder %s28, 1
      %p119 = por %p117, %p118
      %p121 = scmp.ne.s32.totalorder %s106, %s120
      %p122 = scmp.eq.s32.totalorder %s28, 0
      %p123 = por %p121, %p122
      %s125 = sadd.s32 %s124, 1
      %p128 = scmp.eq.s32.totalorder %s22, 1
      %p129 = scmp.ne.s32.totalorder %s124, %s126
      %p130 = scmp.eq.s32.totalorder %s22, 0
      %p131 = por %p129, %p130
      %p132 = scmp.ne.s32.totalorder %s124, %s126
      %p133 = scmp.eq.s32.totalorder %s27, 1
      %p134 = por %p132, %p133
      %p135 = scmp.ne.s32.totalorder %s126, %s127
      %p136 = scmp.eq.s32.totalorder %s27, 0
      %p137 = por %p135, %p136
      %p138 = scmp.ne.s32.totalorder %s126, %s127
      %p139 = scmp.eq.s32.totalorder %s28, 1
      %p140 = por %p138, %p139
      %p142 = scmp.ne.s32.totalorder %s127, %s141
      %p143 = scmp.eq.s32.totalorder %s28, 0
      %p144 = por %p142, %p143
      %s146 = sadd.s32 %s145, 1
      %p149 = scmp.eq.s32.totalorder %s22, 1
      %p150 = scmp.ne.s32.totalorder %s145, %s147
      %p151 = scmp.eq.s32.totalorder %s22, 0
      %p152 = por %p150, %p151
      %p153 = scmp.ne.s32.totalorder %s145, %s147
      %p154 = scmp.eq.s32.totalorder %s27, 1
      %p155 = por %p153, %p154
      %p156 = scmp.ne.s32.totalorder %s147, %s148
      %p157 = scmp.eq.s32.totalorder %s27, 0
      %p158 = por %p156, %p157
      %p159 = scmp.ne.s32.totalorder %s147, %s148
      %p160 = scmp.eq.s32.totalorder %s28, 1
      %p161 = por %p159, %p160
      %p163 = scmp.ne.s32.totalorder %s148, %s162
      %p164 = scmp.eq.s32.totalorder %s28, 0
      %p165 = por %p163, %p164
      %s166 = ssub.s32 %s22, %s29
      %p167 = scmp.eq.s32.totalorder %s166, 0
      %s169 = sadd.s32 %s168, 1
      %s170 = scalar_select %p167, %s168, %s169
      %p173 = pneg %p167
      %p174 = scmp.eq.s32.totalorder %s22, 1
      %p175 = por %p173, %p174
      %p176 = scmp.ne.s32.totalorder %s168, %s171
      %p177 = scmp.eq.s32.totalorder %s22, 0
      %p178 = por %p176, %p177
      %p179 = scmp.ne.s32.totalorder %s168, %s171
      %p180 = scmp.eq.s32.totalorder %s27, 1
      %p181 = por %p179, %p180
      %p182 = scmp.ne.s32.totalorder %s171, %s172
      %p183 = scmp.eq.s32.totalorder %s27, 0
      %p184 = por %p182, %p183
      %p185 = scmp.ne.s32.totalorder %s171, %s172
      %p186 = scmp.eq.s32.totalorder %s28, 1
      %p187 = por %p185, %p186
      %p189 = scmp.ne.s32.totalorder %s172, %s188
      %p190 = scmp.eq.s32.totalorder %s28, 0
      %p191 = por %p189, %p190
      %p192 = scmp.le.s32.totalorder 1, %s22
      %p193 = scmp.lt.s32.totalorder %s22, 3
      %p194 = pnand %p192, %p193
      %p195 = pneg %p194
      // Predicated region
      $region9: #{tpu_custom_call.1} parent=5 // pred_check
        _
      $region10: #{tpu_custom_call.1} parent=5 // pred_check_branch
        %197 = sbr.rel (%p194) target = $region12
      $region11: #{tpu_custom_call.1} parent=5 // pred_region
        %s198 = ssub.s32 %s22, 1
        // Predicated region
        $region13: #{tpu_custom_call.1} parent=11 // pred_check
          %p199 = pneg %p95
        $region14: #{tpu_custom_call.1} parent=11 // pred_check_branch
          %201 = sbr.rel (%p199) target = $region16
        $region15: #{tpu_custom_call.1} parent=11 // pred_region
          %s203 = ssub.s32 1024, 1024
          %204 = vsyncadd [#allocation6], %s203
          %s205 = sshll.u32 [#allocation7], 4
          %s206 = int_to_ptr.vmem [resolvable:$true] %s205
          %211 = dma.hbm_to_vmem [thread:$0]  %s2, 1024, %s206, [#allocation6], 64, 64, 4
        $region16: #{tpu_custom_call.1} parent=11 // pred_fallthru
          _
        // Predicated region
        $region17: #{tpu_custom_call.1} parent=11 // pred_check
          %p212 = pneg %p116
        $region18: #{tpu_custom_call.1} parent=11 // pred_check_branch
          %214 = sbr.rel (%p212) target = $region20
        $region19: #{tpu_custom_call.1} parent=11 // pred_region
          %s216 = ssub.s32 1024, 1024
          %217 = vsyncadd [#allocation9], %s216
          %s218 = sshll.u32 [#allocation8], 4
          %s219 = int_to_ptr.vmem [resolvable:$true] %s218
          %224 = dma.hbm_to_vmem [thread:$0]  %s3, 1024, %s219, [#allocation9], 64, 64, 4
        $region20: #{tpu_custom_call.1} parent=11 // pred_fallthru
          _
        // Predicated region
        $region21: #{tpu_custom_call.1} parent=11 // pred_check
          %p225 = pneg %p137
        $region22: #{tpu_custom_call.1} parent=11 // pred_check_branch
          %227 = sbr.rel (%p225) target = $region24
        $region23: #{tpu_custom_call.1} parent=11 // pred_region
          _
        $region24: #{tpu_custom_call.1} parent=11 // pred_fallthru
          _
        // Predicated region
        $region25: #{tpu_custom_call.1} parent=11 // pred_check
          %p228 = pneg %p158
        $region26: #{tpu_custom_call.1} parent=11 // pred_check_branch
          %230 = sbr.rel (%p228) target = $region28
        $region27: #{tpu_custom_call.1} parent=11 // pred_region
          _
        $region28: #{tpu_custom_call.1} parent=11 // pred_fallthru
          _
      $region12: #{tpu_custom_call.1} parent=5 // pred_fallthru
        _
      %p231 = scmp.lt.s32.totalorder %s22, 2
      // Predicated region
      $region29: #{tpu_custom_call.1} parent=5 // pred_check
        %p232 = pneg %p231
      $region30: #{tpu_custom_call.1} parent=5 // pred_check_branch
        %234 = sbr.rel (%p232) target = $region32
      $region31: #{tpu_custom_call.1} parent=5 // pred_region
        // Predicated region
        $region33: #{tpu_custom_call.1} parent=31 // pred_check
          %p235 = pneg %p42
        $region34: #{tpu_custom_call.1} parent=31 // pred_check_branch
          %237 = sbr.rel (%p235) target = $region36
        $region35: #{tpu_custom_call.1} parent=31 // pred_region
          %s238 = sand.u32 %s32, 1
          %s239 = scalar_lea.sflag [#allocation3], %s238
          %s240 = sand.u32 %s32, 1
          %s241 = smul.addr %s240, 512
          %s242 = scalar_lea.vmem [#allocation2], %s241
          %s243 = smul.u32 4, %s22
          %s245 = ssub.s32 8192, 8192
          %246 = vsyncadd %s239, %s245
          %s247 = smul.addr %s243, 16
          %s248 = smul.addr %s247, 128
          %s249 = scalar_lea.hbm %s0, %s248
          %s250 = sshll.u32 %s242, 4
          %s251 = int_to_ptr.vmem [resolvable:$true] %s250
          %256 = dma.hbm_to_vmem [thread:$0]  %s249, 8192, %s251, %s239, 128, 128, 8
        $region36: #{tpu_custom_call.1} parent=31 // pred_fallthru
          _
        // Predicated region
        $region37: #{tpu_custom_call.1} parent=31 // pred_check
          %p257 = pneg %p68
        $region38: #{tpu_custom_call.1} parent=31 // pred_check_branch
          %259 = sbr.rel (%p257) target = $region40
        $region39: #{tpu_custom_call.1} parent=31 // pred_region
          %s260 = sand.u32 %s22, 1
          %s261 = scalar_lea.sflag [#allocation6], %s260
          %s262 = sand.u32 %s58, 1
          %s263 = smul.addr %s262, 4
          %s264 = scalar_lea.vmem [#allocation5], %s263
          %s265 = smul.u32 4, %s22
          %s267 = ssub.s32 64, 64
          %268 = vsyncadd %s261, %s267
          %s269 = smul.addr %s265, 16
          %s270 = scalar_lea.hbm %s1, %s269
          %s271 = sshll.u32 %s264, 4
          %s272 = int_to_ptr.vmem [resolvable:$true] %s271
          %277 = dma.hbm_to_vmem [thread:$0]  %s270, 64, %s272, %s261, 16, 16, 1
        $region40: #{tpu_custom_call.1} parent=31 // pred_fallthru
          _
      $region32: #{tpu_custom_call.1} parent=5 // pred_fallthru
        _
      %p278 = scmp.le.s32.totalorder 1, %s22
      %p279 = scmp.lt.s32.totalorder %s22, 3
      %p280 = pnand %p278, %p279
      %p281 = pneg %p280
      // Predicated region
      $region41: #{tpu_custom_call.1} parent=5 // pred_check
        _
      $region42: #{tpu_custom_call.1} parent=5 // pred_check_branch
        %283 = sbr.rel (%p280) target = $region44
      $region43: #{tpu_custom_call.1} parent=5 // pred_region
        %s284 = ssub.s32 %s22, 1
        %s285 = sand.u32 %s35, 1
        %s286 = scalar_lea.sflag [#allocation3], %s285
        %s287 = sand.u32 %s35, 1
        %s288 = smul.addr %s287, 512
        %s289 = scalar_lea.vmem [#allocation2], %s288
        // Predicated region
        $region45: #{tpu_custom_call.1} parent=43 // pred_check
          %p290 = pneg %p48
        $region46: #{tpu_custom_call.1} parent=43 // pred_check_branch
          %292 = sbr.rel (%p290) target = $region48
        $region47: #{tpu_custom_call.1} parent=43 // pred_region
          %293 = dma.done %s286, 8192
        $region48: #{tpu_custom_call.1} parent=43 // pred_fallthru
          _
        %s294 = sand.u32 %s27, 1
        %s295 = scalar_lea.sflag [#allocation6], %s294
        %s296 = sand.u32 %s61, 1
        %s297 = smul.addr %s296, 4
        %s298 = scalar_lea.vmem [#allocation5], %s297
        // Predicated region
        $region49: #{tpu_custom_call.1} parent=43 // pred_check
          %p299 = pneg %p74
        $region50: #{tpu_custom_call.1} parent=43 // pred_check_branch
          %301 = sbr.rel (%p299) target = $region52
        $region51: #{tpu_custom_call.1} parent=43 // pred_region
          %302 = dma.done %s295, 64
        $region52: #{tpu_custom_call.1} parent=43 // pred_fallthru
          _
        // Predicated region
        $region53: #{tpu_custom_call.1} parent=43 // pred_check
          %p303 = pneg %p95
        $region54: #{tpu_custom_call.1} parent=43 // pred_check_branch
          %305 = sbr.rel (%p303) target = $region56
        $region55: #{tpu_custom_call.1} parent=43 // pred_region
          %306 = dma.done [#allocation6], 1024
        $region56: #{tpu_custom_call.1} parent=43 // pred_fallthru
          _
        // Predicated region
        $region57: #{tpu_custom_call.1} parent=43 // pred_check
          %p307 = pneg %p116
        $region58: #{tpu_custom_call.1} parent=43 // pred_check_branch
          %309 = sbr.rel (%p307) target = $region60
        $region59: #{tpu_custom_call.1} parent=43 // pred_region
          %310 = dma.done [#allocation9], 1024
        $region60: #{tpu_custom_call.1} parent=43 // pred_fallthru
          _
        %s311 = sand.u32 %s35, 1
        %s312 = scalar_lea.sflag [#allocation3], %s311
        %s313 = sand.u32 %s35, 1
        %s314 = smul.addr %s313, 512
        %s315 = scalar_lea.vmem [#allocation2], %s314
        %p316 = pneg %p48
        %p317 = pneg %p45
        %s318 = sand.u32 %s27, 1
        %s319 = scalar_lea.sflag [#allocation6], %s318
        %s320 = sand.u32 %s61, 1
        %s321 = smul.addr %s320, 4
        %s322 = scalar_lea.vmem [#allocation5], %s321
        %p323 = pneg %p74
        %p324 = pneg %p71
        %p325 = pneg %p95
        %p326 = pneg %p92
        %p327 = pneg %p116
        %p328 = pneg %p113
        %p329 = pneg %p137
        %p330 = pneg %p134
        %p331 = pneg %p158
        %p332 = pneg %p155
        %p333 = pneg %p184
        %p334 = pneg %p181
        %s335 = sand.u32 %s171, 1
        %s336 = scalar_lea.sflag [#allocation4], %s335
        %s337 = sand.u32 %s171, 1
        %s338 = smul.addr %s337, 4
        %s339 = scalar_lea.vmem [#allocation10], %s338
        %s340 = smul.u32 4, %s27
        %s341 = smul.u32 4, %s27
        %s342 = smul.u32 4, %s27
        %v344 = vld [vmem:[%s298] sm:$0x1]
        %v345 = vld [vmem:[%s298 + $0x1] sm:$0x1]
        %v346 = vld [vmem:[%s298 + $0x2] sm:$0x1]
        %v347 = vld [vmem:[%s298 + $0x3] sm:$0x1]
        %v348 = vpack.c.bf16 %v344, %v344
        %v349 = vpack.c.bf16 %v345, %v345
        %v350 = vpack.c.bf16 %v346, %v346
        %v351 = vpack.c.bf16 %v347, %v347
        %v352 = vld [vmem:[#allocation8] sm:$0xf]
        %v353 = vld [vmem:[#allocation8 + $0x4] sm:$0xf]
        %v354 = vld [vmem:[#allocation8 + $0x8] sm:$0xf]
        %v355 = vld [vmem:[#allocation8 + $0xc] sm:$0xf]
        %v356 = vld [vmem:[#allocation8 + $0x10] sm:$0xf]
        %v357 = vld [vmem:[#allocation8 + $0x14] sm:$0xf]
        %v358 = vld [vmem:[#allocation8 + $0x18] sm:$0xf]
        %v359 = vld [vmem:[#allocation8 + $0x1c] sm:$0xf]
        %v360 = vld [vmem:[#allocation8 + $0x20] sm:$0xf]
        %v361 = vld [vmem:[#allocation8 + $0x24] sm:$0xf]
        %v362 = vld [vmem:[#allocation8 + $0x28] sm:$0xf]
        %v363 = vld [vmem:[#allocation8 + $0x2c] sm:$0xf]
        %v364 = vld [vmem:[#allocation8 + $0x30] sm:$0xf]
        %v365 = vld [vmem:[#allocation8 + $0x34] sm:$0xf]
        %v366 = vld [vmem:[#allocation8 + $0x38] sm:$0xf]
        %v367 = vld [vmem:[#allocation8 + $0x3c] sm:$0xf]
        %v368 = vld [vmem:[%s4] sm:$0x1]
        %v370 = vlaneseq
        %v371 = vshrl.u32 %v370, 7
        %v372 = vsub.s32 0, %v371
        %v373 = vrot.slane %v368, %v372
        %v379 = vunpack.c.l.b16 %v348
        %v380 = vunpack.c.l.b16 %v349
        %v381 = vunpack.c.l.b16 %v350
        %v382 = vunpack.c.l.b16 %v351
        %v383 = vrot.slane %v380, 7
        %vm384 = vcmask 1041409
        %v385 = vsel %vm384, %v383, %v379
        %v386 = vrot.slane %v381, 6
        %vm387 = vcmask 1042434
        %v388 = vsel %vm387, %v386, %v385
        %v389 = vrot.slane %v382, 5
        %vm390 = vcmask 1043459
        %v391 = vsel %vm390, %v389, %v388
        %v392 = vpack.c.b16 %v391, %v391
        %v410 = vunpack.c.l.b16 %v352
        %v411 = vunpack.c.l.b16 %v353
        %v412 = vunpack.c.l.b16 %v354
        %v413 = vunpack.c.l.b16 %v355
        %v414 = vunpack.c.l.b16 %v356
        %v415 = vunpack.c.l.b16 %v357
        %v416 = vunpack.c.l.b16 %v358
        %v417 = vunpack.c.l.b16 %v359
        %v418 = vunpack.c.l.b16 %v360
        %v419 = vunpack.c.l.b16 %v361
        %v420 = vunpack.c.l.b16 %v362
        %v421 = vunpack.c.l.b16 %v363
        %v422 = vunpack.c.l.b16 %v364
        %v423 = vunpack.c.l.b16 %v365
        %v424 = vunpack.c.l.b16 %v366
        %v425 = vunpack.c.l.b16 %v367
        %v426 = vpack.c.b16 %v411, %v410
        %v427 = vpack.c.b16 %v413, %v412
        %v428 = vpack.c.b16 %v415, %v414
        %v429 = vpack.c.b16 %v417, %v416
        %v430 = vpack.c.b16 %v419, %v418
        %v431 = vpack.c.b16 %v421, %v420
        %v432 = vpack.c.b16 %v423, %v422
        %v433 = vpack.c.b16 %v425, %v424
        %442 = vmatprep.subr.bf16.mxu0 0
        %443 = vmatpush1.bf16.msra.mxu0 %v426
        %444 = vmatprep.subr.bf16.mxu0 0
        %445 = vmatpush1.bf16.msra.mxu0 %v427
        %446 = vmatprep.subr.bf16.mxu0 0
        %447 = vmatpush1.bf16.msra.mxu0 %v428
        %448 = vmatprep.subr.bf16.mxu0 0
        %449 = vmatpush1.bf16.msra.mxu0 %v429
        %450 = vmatprep.subr.bf16.mxu0 0
        %451 = vmatpush1.bf16.msra.mxu0 %v430
        %452 = vmatprep.subr.bf16.mxu0 0
        %453 = vmatpush1.bf16.msra.mxu0 %v431
        %454 = vmatprep.subr.bf16.mxu0 0
        %455 = vmatpush1.bf16.msra.mxu0 %v432
        %456 = vmatprep.subr.bf16.mxu0 0
        %457 = vmatpush1.bf16.msra.mxu0 %v433
        %458 = vmatprep.subr.bf16.mxu0 0
        %459 = vmatpush1.bf16.msra.mxu0 0
        %460 = vmatprep.subr.bf16.mxu0 0
        %461 = vmatpush1.bf16.msra.mxu0 0
        %462 = vmatprep.subr.bf16.mxu0 0
        %463 = vmatpush1.bf16.msra.mxu0 0
        %464 = vmatprep.subr.bf16.mxu0 0
        %465 = vmatpush1.bf16.msra.mxu0 0
        %466 = vmatprep.subr.bf16.mxu0 0
        %467 = vmatpush1.bf16.msra.mxu0 0
        %468 = vmatprep.subr.bf16.mxu0 0
        %469 = vmatpush1.bf16.msra.mxu0 0
        %470 = vmatprep.subr.bf16.mxu0 0
        %471 = vmatpush1.bf16.msra.mxu0 0
        %472 = vmatprep.subr.bf16.mxu0 0
        %473 = vmatpush1.bf16.msra.mxu0 0
        %474 = vmatprep.mubr.bf16.mxu0 0
        %475 = vmatmul.mubr.bf16.gmra.mrb[0].mxu0 %v392
        %v476 = vpop.f32.mrb[0].mxu0
        %v477 = vadd.f32 %v373, %v476
        %v478 = vpop.f32.mrb[0].mxu0
        %v479 = vpop.f32.mrb[0].mxu0
        %v480 = vpop.f32.mrb[0].mxu0
        %481 = vdwg.mxu0
        %v482 = vld [vmem:[%s289] sm:$0xff]
        %v483 = vld [vmem:[%s289 + $0x8] sm:$0xff]
        %v484 = vld [vmem:[%s289 + $0x10] sm:$0xff]
        %v485 = vld [vmem:[%s289 + $0x18] sm:$0xff]
        %v486 = vld [vmem:[%s289 + $0x20] sm:$0xff]
        %v487 = vld [vmem:[%s289 + $0x28] sm:$0xff]
        %v488 = vld [vmem:[%s289 + $0x30] sm:$0xff]
        %v489 = vld [vmem:[%s289 + $0x38] sm:$0xff]
        %v490 = vld [vmem:[%s289 + $0x40] sm:$0xff]
        %v491 = vld [vmem:[%s289 + $0x48] sm:$0xff]
        %v492 = vld [vmem:[%s289 + $0x50] sm:$0xff]
        %v493 = vld [vmem:[%s289 + $0x58] sm:$0xff]
        %v494 = vld [vmem:[%s289 + $0x60] sm:$0xff]
        %v495 = vld [vmem:[%s289 + $0x68] sm:$0xff]
        %v496 = vld [vmem:[%s289 + $0x70] sm:$0xff]
        %v497 = vld [vmem:[%s289 + $0x78] sm:$0xff]
        %v498 = vld [vmem:[%s289 + $0x80] sm:$0xff]
        %v499 = vld [vmem:[%s289 + $0x88] sm:$0xff]
        %v500 = vld [vmem:[%s289 + $0x90] sm:$0xff]
        %v501 = vld [vmem:[%s289 + $0x98] sm:$0xff]
        %v502 = vld [vmem:[%s289 + $0xa0] sm:$0xff]
        %v503 = vld [vmem:[%s289 + $0xa8] sm:$0xff]
        %v504 = vld [vmem:[%s289 + $0xb0] sm:$0xff]
        %v505 = vld [vmem:[%s289 + $0xb8] sm:$0xff]
        %v506 = vld [vmem:[%s289 + $0xc0] sm:$0xff]
        %v507 = vld [vmem:[%s289 + $0xc8] sm:$0xff]
        %v508 = vld [vmem:[%s289 + $0xd0] sm:$0xff]
        %v509 = vld [vmem:[%s289 + $0xd8] sm:$0xff]
        %v510 = vld [vmem:[%s289 + $0xe0] sm:$0xff]
        %v511 = vld [vmem:[%s289 + $0xe8] sm:$0xff]
        %v512 = vld [vmem:[%s289 + $0xf0] sm:$0xff]
        %v513 = vld [vmem:[%s289 + $0xf8] sm:$0xff]
        %v514 = vld [vmem:[%s289 + $0x100] sm:$0xff]
        %v515 = vld [vmem:[%s289 + $0x108] sm:$0xff]
        %v516 = vld [vmem:[%s289 + $0x110] sm:$0xff]
        %v517 = vld [vmem:[%s289 + $0x118] sm:$0xff]
        %v518 = vld [vmem:[%s289 + $0x120] sm:$0xff]
        %v519 = vld [vmem:[%s289 + $0x128] sm:$0xff]
        %v520 = vld [vmem:[%s289 + $0x130] sm:$0xff]
        %v521 = vld [vmem:[%s289 + $0x138] sm:$0xff]
        %v522 = vld [vmem:[%s289 + $0x140] sm:$0xff]
        %v523 = vld [vmem:[%s289 + $0x148] sm:$0xff]
        %v524 = vld [vmem:[%s289 + $0x150] sm:$0xff]
        %v525 = vld [vmem:[%s289 + $0x158] sm:$0xff]
        %v526 = vld [vmem:[%s289 + $0x160] sm:$0xff]
        %v527 = vld [vmem:[%s289 + $0x168] sm:$0xff]
        %v528 = vld [vmem:[%s289 + $0x170] sm:$0xff]
        %v529 = vld [vmem:[%s289 + $0x178] sm:$0xff]
        %v530 = vld [vmem:[%s289 + $0x180] sm:$0xff]
        %v531 = vld [vmem:[%s289 + $0x188] sm:$0xff]
        %v532 = vld [vmem:[%s289 + $0x190] sm:$0xff]
        %v533 = vld [vmem:[%s289 + $0x198] sm:$0xff]
        %v534 = vld [vmem:[%s289 + $0x1a0] sm:$0xff]
        %v535 = vld [vmem:[%s289 + $0x1a8] sm:$0xff]
        %v536 = vld [vmem:[%s289 + $0x1b0] sm:$0xff]
        %v537 = vld [vmem:[%s289 + $0x1b8] sm:$0xff]
        %v538 = vld [vmem:[%s289 + $0x1c0] sm:$0xff]
        %v539 = vld [vmem:[%s289 + $0x1c8] sm:$0xff]
        %v540 = vld [vmem:[%s289 + $0x1d0] sm:$0xff]
        %v541 = vld [vmem:[%s289 + $0x1d8] sm:$0xff]
        %v542 = vld [vmem:[%s289 + $0x1e0] sm:$0xff]
        %v543 = vld [vmem:[%s289 + $0x1e8] sm:$0xff]
        %v544 = vld [vmem:[%s289 + $0x1f0] sm:$0xff]
        %v545 = vld [vmem:[%s289 + $0x1f8] sm:$0xff]
        %v546 = vpack.c.bf16 %v483, %v482
        %v547 = vpack.c.bf16 %v485, %v484
        %v548 = vpack.c.bf16 %v487, %v486
        %v549 = vpack.c.bf16 %v489, %v488
        %v550 = vpack.c.bf16 %v491, %v490
        %v551 = vpack.c.bf16 %v493, %v492
        %v552 = vpack.c.bf16 %v495, %v494
        %v553 = vpack.c.bf16 %v497, %v496
        %v554 = vpack.c.bf16 %v499, %v498
        %v555 = vpack.c.bf16 %v501, %v500
        %v556 = vpack.c.bf16 %v503, %v502
        %v557 = vpack.c.bf16 %v505, %v504
        %v558 = vpack.c.bf16 %v507, %v506
        %v559 = vpack.c.bf16 %v509, %v508
        %v560 = vpack.c.bf16 %v511, %v510
        %v561 = vpack.c.bf16 %v513, %v512
        %v562 = vpack.c.bf16 %v515, %v514
        %v563 = vpack.c.bf16 %v517, %v516
        %v564 = vpack.c.bf16 %v519, %v518
        %v565 = vpack.c.bf16 %v521, %v520
        %v566 = vpack.c.bf16 %v523, %v522
        %v567 = vpack.c.bf16 %v525, %v524
        %v568 = vpack.c.bf16 %v527, %v526
        %v569 = vpack.c.bf16 %v529, %v528
        %v570 = vpack.c.bf16 %v531, %v530
        %v571 = vpack.c.bf16 %v533, %v532
        %v572 = vpack.c.bf16 %v535, %v534
        %v573 = vpack.c.bf16 %v537, %v536
        %v574 = vpack.c.bf16 %v539, %v538
        %v575 = vpack.c.bf16 %v541, %v540
        %v576 = vpack.c.bf16 %v543, %v542
        %v577 = vpack.c.bf16 %v545, %v544
        %v578 = vld [vmem:[#allocation7] sm:$0xf]
        %v579 = vld [vmem:[#allocation7 + $0x4] sm:$0xf]
        %v580 = vld [vmem:[#allocation7 + $0x8] sm:$0xf]
        %v581 = vld [vmem:[#allocation7 + $0xc] sm:$0xf]
        %v582 = vld [vmem:[#allocation7 + $0x10] sm:$0xf]
        %v583 = vld [vmem:[#allocation7 + $0x14] sm:$0xf]
        %v584 = vld [vmem:[#allocation7 + $0x18] sm:$0xf]
        %v585 = vld [vmem:[#allocation7 + $0x1c] sm:$0xf]
        %v586 = vld [vmem:[#allocation7 + $0x20] sm:$0xf]
        %v587 = vld [vmem:[#allocation7 + $0x24] sm:$0xf]
        %v588 = vld [vmem:[#allocation7 + $0x28] sm:$0xf]
        %v589 = vld [vmem:[#allocation7 + $0x2c] sm:$0xf]
        %v590 = vld [vmem:[#allocation7 + $0x30] sm:$0xf]
        %v591 = vld [vmem:[#allocation7 + $0x34] sm:$0xf]
        %v592 = vld [vmem:[#allocation7 + $0x38] sm:$0xf]
        %v593 = vld [vmem:[#allocation7 + $0x3c] sm:$0xf]
        %v610 = vunpack.c.l.b16 %v578
        %v611 = vunpack.c.l.b16 %v579
        %v612 = vunpack.c.l.b16 %v580
        %v613 = vunpack.c.l.b16 %v581
        %v614 = vunpack.c.l.b16 %v582
        %v615 = vunpack.c.l.b16 %v583
        %v616 = vunpack.c.l.b16 %v584
        %v617 = vunpack.c.l.b16 %v585
        %v618 = vunpack.c.l.b16 %v586
        %v619 = vunpack.c.l.b16 %v587
        %v620 = vunpack.c.l.b16 %v588
        %v621 = vunpack.c.l.b16 %v589
        %v622 = vunpack.c.l.b16 %v590
        %v623 = vunpack.c.l.b16 %v591
        %v624 = vunpack.c.l.b16 %v592
        %v625 = vunpack.c.l.b16 %v593
        %v626 = vpack.c.b16 %v611, %v610
        %v627 = vpack.c.b16 %v613, %v612
        %v628 = vpack.c.b16 %v615, %v614
        %v629 = vpack.c.b16 %v617, %v616
        %v630 = vpack.c.b16 %v619, %v618
        %v631 = vpack.c.b16 %v621, %v620
        %v632 = vpack.c.b16 %v623, %v622
        %v633 = vpack.c.b16 %v625, %v624
        %642 = vmatprep.subr.bf16.mxu0 0
        %643 = vmatpush1.bf16.msra.mxu0 %v626
        %644 = vmatprep.subr.bf16.mxu0 0
        %645 = vmatpush1.bf16.msra.mxu0 %v627
        %646 = vmatprep.subr.bf16.mxu0 0
        %647 = vmatpush1.bf16.msra.mxu0 %v628
        %648 = vmatprep.subr.bf16.mxu0 0
        %649 = vmatpush1.bf16.msra.mxu0 %v629
        %650 = vmatprep.subr.bf16.mxu0 0
        %651 = vmatpush1.bf16.msra.mxu0 %v630
        %652 = vmatprep.subr.bf16.mxu0 0
        %653 = vmatpush1.bf16.msra.mxu0 %v631
        %654 = vmatprep.subr.bf16.mxu0 0
        %655 = vmatpush1.bf16.msra.mxu0 %v632
        %656 = vmatprep.subr.bf16.mxu0 0
        %657 = vmatpush1.bf16.msra.mxu0 %v633
        %658 = vmatprep.subr.bf16.mxu0 0
        %659 = vmatpush1.bf16.msra.mxu0 0
        %660 = vmatprep.subr.bf16.mxu0 0
        %661 = vmatpush1.bf16.msra.mxu0 0
        %662 = vmatprep.subr.bf16.mxu0 0
        %663 = vmatpush1.bf16.msra.mxu0 0
        %664 = vmatprep.subr.bf16.mxu0 0
        %665 = vmatpush1.bf16.msra.mxu0 0
        %666 = vmatprep.subr.bf16.mxu0 0
        %667 = vmatpush1.bf16.msra.mxu0 0
        %668 = vmatprep.subr.bf16.mxu0 0
        %669 = vmatpush1.bf16.msra.mxu0 0
        %670 = vmatprep.subr.bf16.mxu0 0
        %671 = vmatpush1.bf16.msra.mxu0 0
        %672 = vmatprep.subr.bf16.mxu0 0
        %673 = vmatpush1.bf16.msra.mxu0 0
        %674 = vmatprep.mubr.bf16.mxu0 0
        %675 = vmatmul.mubr.bf16.gmra.mrb[0].mxu0 %v546
        %v676 = vpop.f32.mrb[0].mxu0
        %v677 = vadd.f32 0.0, %v676
        %v678 = vpop.f32.mrb[0].mxu0
        %v679 = vpop.f32.mrb[0].mxu0
        %v680 = vadd.f32 0.0, %v679
        %v681 = vpop.f32.mrb[0].mxu0
        %682 = vmatprep.mubr.bf16.mxu0 0
        %683 = vmatmul.mubr.bf16.gmra.mrb[0].mxu0 %v547
        %v684 = vpop.f32.mrb[0].mxu0
        %v685 = vadd.f32 0.0, %v684
        %v686 = vpop.f32.mrb[0].mxu0
        %v687 = vpop.f32.mrb[0].mxu0
        %v688 = vadd.f32 0.0, %v687
        %v689 = vpop.f32.mrb[0].mxu0
        %690 = vmatprep.mubr.bf16.mxu0 0
        %691 = vmatmul.mubr.bf16.gmra.mrb[0].mxu0 %v548
        %v692 = vpop.f32.mrb[0].mxu0
        %v693 = vadd.f32 0.0, %v692
        %v694 = vpop.f32.mrb[0].mxu0
        %v695 = vpop.f32.mrb[0].mxu0
        %v696 = vadd.f32 0.0, %v695
        %v697 = vpop.f32.mrb[0].mxu0
        %698 = vmatprep.mubr.bf16.mxu0 0
        %699 = vmatmul.mubr.bf16.gmra.mrb[0].mxu0 %v549
        %v700 = vpop.f32.mrb[0].mxu0
        %v701 = vadd.f32 0.0, %v700
        %v702 = vpop.f32.mrb[0].mxu0
        %v703 = vpop.f32.mrb[0].mxu0
        %v704 = vadd.f32 0.0, %v703
        %v705 = vpop.f32.mrb[0].mxu0
        %706 = vmatprep.mubr.bf16.mxu0 0
        %707 = vmatmul.mubr.bf16.gmra.mrb[0].mxu0 %v550
        %v708 = vpop.f32.mrb[0].mxu0
        %v709 = vadd.f32 0.0, %v708
        %v710 = vpop.f32.mrb[0].mxu0
        %v711 = vpop.f32.mrb[0].mxu0
        %v712 = vadd.f32 0.0, %v711
        %v713 = vpop.f32.mrb[0].mxu0
        %714 = vmatprep.mubr.bf16.mxu0 0
        %715 = vmatmul.mubr.bf16.gmra.mrb[0].mxu0 %v551
        %v716 = vpop.f32.mrb[0].mxu0
        %v717 = vadd.f32 0.0, %v716
        %v718 = vpop.f32.mrb[0].mxu0
        %v719 = vpop.f32.mrb[0].mxu0
        %v720 = vadd.f32 0.0, %v719
        %v721 = vpop.f32.mrb[0].mxu0
        %722 = vmatprep.mubr.bf16.mxu0 0
        %723 = vmatmul.mubr.bf16.gmra.mrb[0].mxu0 %v552
        %v724 = vpop.f32.mrb[0].mxu0
        %v725 = vadd.f32 0.0, %v724
        %v726 = vpop.f32.mrb[0].mxu0
        %v727 = vpop.f32.mrb[0].mxu0
        %v728 = vadd.f32 0.0, %v727
        %v729 = vpop.f32.mrb[0].mxu0
        %730 = vmatprep.mubr.bf16.mxu0 0
        %731 = vmatmul.mubr.bf16.gmra.mrb[0].mxu0 %v553
        %v732 = vpop.f32.mrb[0].mxu0
        %v733 = vadd.f32 0.0, %v732
        %v734 = vpop.f32.mrb[0].mxu0
        %v735 = vpop.f32.mrb[0].mxu0
        %v736 = vadd.f32 0.0, %v735
        %v737 = vpop.f32.mrb[0].mxu0
        %738 = vmatprep.mubr.bf16.mxu0 0
        %739 = vmatmul.mubr.bf16.gmra.mrb[0].mxu0 %v554
        %v740 = vpop.f32.mrb[0].mxu0
        %v741 = vadd.f32 0.0, %v740
        %v742 = vpop.f32.mrb[0].mxu0
        %v743 = vpop.f32.mrb[0].mxu0
        %v744 = vadd.f32 0.0, %v743
        %v745 = vpop.f32.mrb[0].mxu0
        %746 = vmatprep.mubr.bf16.mxu0 0
        %747 = vmatmul.mubr.bf16.gmra.mrb[0].mxu0 %v555
        %v748 = vpop.f32.mrb[0].mxu0
        %v749 = vadd.f32 0.0, %v748
        %v750 = vpop.f32.mrb[0].mxu0
        %v751 = vpop.f32.mrb[0].mxu0
        %v752 = vadd.f32 0.0, %v751
        %v753 = vpop.f32.mrb[0].mxu0
        %754 = vmatprep.mubr.bf16.mxu0 0
        %755 = vmatmul.mubr.bf16.gmra.mrb[0].mxu0 %v556
        %v756 = vpop.f32.mrb[0].mxu0
        %v757 = vadd.f32 0.0, %v756
        %v758 = vpop.f32.mrb[0].mxu0
        %v759 = vpop.f32.mrb[0].mxu0
        %v760 = vadd.f32 0.0, %v759
        %v761 = vpop.f32.mrb[0].mxu0
        %762 = vmatprep.mubr.bf16.mxu0 0
        %763 = vmatmul.mubr.bf16.gmra.mrb[0].mxu0 %v557
        %v764 = vpop.f32.mrb[0].mxu0
        %v765 = vadd.f32 0.0, %v764
        %v766 = vpop.f32.mrb[0].mxu0
        %v767 = vpop.f32.mrb[0].mxu0
        %v768 = vadd.f32 0.0, %v767
        %v769 = vpop.f32.mrb[0].mxu0
        %770 = vmatprep.mubr.bf16.mxu0 0
        %771 = vmatmul.mubr.bf16.gmra.mrb[0].mxu0 %v558
        %v772 = vpop.f32.mrb[0].mxu0
        %v773 = vadd.f32 0.0, %v772
        %v774 = vpop.f32.mrb[0].mxu0
        %v775 = vpop.f32.mrb[0].mxu0
        %v776 = vadd.f32 0.0, %v775
        %v777 = vpop.f32.mrb[0].mxu0
        %778 = vmatprep.mubr.bf16.mxu0 0
        %779 = vmatmul.mubr.bf16.gmra.mrb[0].mxu0 %v559
        %v780 = vpop.f32.mrb[0].mxu0
        %v781 = vadd.f32 0.0, %v780
        %v782 = vpop.f32.mrb[0].mxu0
        %v783 = vpop.f32.mrb[0].mxu0
        %v784 = vadd.f32 0.0, %v783
        %v785 = vpop.f32.mrb[0].mxu0
        %786 = vmatprep.mubr.bf16.mxu0 0
        %787 = vmatmul.mubr.bf16.gmra.mrb[0].mxu0 %v560
        %v788 = vpop.f32.mrb[0].mxu0
        %v789 = vadd.f32 0.0, %v788
        %v790 = vpop.f32.mrb[0].mxu0
        %v791 = vpop.f32.mrb[0].mxu0
        %v792 = vadd.f32 0.0, %v791
        %v793 = vpop.f32.mrb[0].mxu0
        %794 = vmatprep.mubr.bf16.mxu0 0
        %795 = vmatmul.mubr.bf16.gmra.mrb[0].mxu0 %v561
        %v796 = vpop.f32.mrb[0].mxu0
        %v797 = vadd.f32 0.0, %v796
        %v798 = vpop.f32.mrb[0].mxu0
        %v799 = vpop.f32.mrb[0].mxu0
        %v800 = vadd.f32 0.0, %v799
        %v801 = vpop.f32.mrb[0].mxu0
        %802 = vmatprep.mubr.bf16.mxu0 0
        %803 = vmatmul.mubr.bf16.gmra.mrb[0].mxu0 %v562
        %v804 = vpop.f32.mrb[0].mxu0
        %v805 = vadd.f32 0.0, %v804
        %v806 = vpop.f32.mrb[0].mxu0
        %v807 = vpop.f32.mrb[0].mxu0
        %v808 = vadd.f32 0.0, %v807
        %v809 = vpop.f32.mrb[0].mxu0
        %810 = vmatprep.mubr.bf16.mxu0 0
        %811 = vmatmul.mubr.bf16.gmra.mrb[0].mxu0 %v563
        %v812 = vpop.f32.mrb[0].mxu0
        %v813 = vadd.f32 0.0, %v812
        %v814 = vpop.f32.mrb[0].mxu0
        %v815 = vpop.f32.mrb[0].mxu0
        %v816 = vadd.f32 0.0, %v815
        %v817 = vpop.f32.mrb[0].mxu0
        %818 = vmatprep.mubr.bf16.mxu0 0
        %819 = vmatmul.mubr.bf16.gmra.mrb[0].mxu0 %v564
        %v820 = vpop.f32.mrb[0].mxu0
        %v821 = vadd.f32 0.0, %v820
        %v822 = vpop.f32.mrb[0].mxu0
        %v823 = vpop.f32.mrb[0].mxu0
        %v824 = vadd.f32 0.0, %v823
        %v825 = vpop.f32.mrb[0].mxu0
        %826 = vmatprep.mubr.bf16.mxu0 0
        %827 = vmatmul.mubr.bf16.gmra.mrb[0].mxu0 %v565
        %v828 = vpop.f32.mrb[0].mxu0
        %v829 = vadd.f32 0.0, %v828
        %v830 = vpop.f32.mrb[0].mxu0
        %v831 = vpop.f32.mrb[0].mxu0
        %v832 = vadd.f32 0.0, %v831
        %v833 = vpop.f32.mrb[0].mxu0
        %834 = vmatprep.mubr.bf16.mxu0 0
        %835 = vmatmul.mubr.bf16.gmra.mrb[0].mxu0 %v566
        %v836 = vpop.f32.mrb[0].mxu0
        %v837 = vadd.f32 0.0, %v836
        %v838 = vpop.f32.mrb[0].mxu0
        %v839 = vpop.f32.mrb[0].mxu0
        %v840 = vadd.f32 0.0, %v839
        %v841 = vpop.f32.mrb[0].mxu0
        %842 = vmatprep.mubr.bf16.mxu0 0
        %843 = vmatmul.mubr.bf16.gmra.mrb[0].mxu0 %v567
        %v844 = vpop.f32.mrb[0].mxu0
        %v845 = vadd.f32 0.0, %v844
        %v846 = vpop.f32.mrb[0].mxu0
        %v847 = vpop.f32.mrb[0].mxu0
        %v848 = vadd.f32 0.0, %v847
        %v849 = vpop.f32.mrb[0].mxu0
        %850 = vmatprep.mubr.bf16.mxu0 0
        %851 = vmatmul.mubr.bf16.gmra.mrb[0].mxu0 %v568
        %v852 = vpop.f32.mrb[0].mxu0
        %v853 = vadd.f32 0.0, %v852
        %v854 = vpop.f32.mrb[0].mxu0
        %v855 = vpop.f32.mrb[0].mxu0
        %v856 = vadd.f32 0.0, %v855
        %v857 = vpop.f32.mrb[0].mxu0
        %858 = vmatprep.mubr.bf16.mxu0 0
        %859 = vmatmul.mubr.bf16.gmra.mrb[0].mxu0 %v569
        %v860 = vpop.f32.mrb[0].mxu0
        %v861 = vadd.f32 0.0, %v860
        %v862 = vpop.f32.mrb[0].mxu0
        %v863 = vpop.f32.mrb[0].mxu0
        %v864 = vadd.f32 0.0, %v863
        %v865 = vpop.f32.mrb[0].mxu0
        %866 = vmatprep.mubr.bf16.mxu0 0
        %867 = vmatmul.mubr.bf16.gmra.mrb[0].mxu0 %v570
        %v868 = vpop.f32.mrb[0].mxu0
        %v869 = vadd.f32 0.0, %v868
        %v870 = vpop.f32.mrb[0].mxu0
        %v871 = vpop.f32.mrb[0].mxu0
        %v872 = vadd.f32 0.0, %v871
        %v873 = vpop.f32.mrb[0].mxu0
        %874 = vmatprep.mubr.bf16.mxu0 0
        %875 = vmatmul.mubr.bf16.gmra.mrb[0].mxu0 %v571
        %v876 = vpop.f32.mrb[0].mxu0
        %v877 = vadd.f32 0.0, %v876
        %v878 = vpop.f32.mrb[0].mxu0
        %v879 = vpop.f32.mrb[0].mxu0
        %v880 = vadd.f32 0.0, %v879
        %v881 = vpop.f32.mrb[0].mxu0
        %882 = vmatprep.mubr.bf16.mxu0 0
        %883 = vmatmul.mubr.bf16.gmra.mrb[0].mxu0 %v572
        %v884 = vpop.f32.mrb[0].mxu0
        %v885 = vadd.f32 0.0, %v884
        %v886 = vpop.f32.mrb[0].mxu0
        %v887 = vpop.f32.mrb[0].mxu0
        %v888 = vadd.f32 0.0, %v887
        %v889 = vpop.f32.mrb[0].mxu0
        %890 = vmatprep.mubr.bf16.mxu0 0
        %891 = vmatmul.mubr.bf16.gmra.mrb[0].mxu0 %v573
        %v892 = vpop.f32.mrb[0].mxu0
        %v893 = vadd.f32 0.0, %v892
        %v894 = vpop.f32.mrb[0].mxu0
        %v895 = vpop.f32.mrb[0].mxu0
        %v896 = vadd.f32 0.0, %v895
        %v897 = vpop.f32.mrb[0].mxu0
        %898 = vmatprep.mubr.bf16.mxu0 0
        %899 = vmatmul.mubr.bf16.gmra.mrb[0].mxu0 %v574
        %v900 = vpop.f32.mrb[0].mxu0
        %v901 = vadd.f32 0.0, %v900
        %v902 = vpop.f32.mrb[0].mxu0
        %v903 = vpop.f32.mrb[0].mxu0
        %v904 = vadd.f32 0.0, %v903
        %v905 = vpop.f32.mrb[0].mxu0
        %906 = vmatprep.mubr.bf16.mxu0 0
        %907 = vmatmul.mubr.bf16.gmra.mrb[0].mxu0 %v575
        %v908 = vpop.f32.mrb[0].mxu0
        %v909 = vadd.f32 0.0, %v908
        %v910 = vpop.f32.mrb[0].mxu0
        %v911 = vpop.f32.mrb[0].mxu0
        %v912 = vadd.f32 0.0, %v911
        %v913 = vpop.f32.mrb[0].mxu0
        %914 = vmatprep.mubr.bf16.mxu0 0
        %915 = vmatmul.mubr.bf16.gmra.mrb[0].mxu0 %v576
        %v916 = vpop.f32.mrb[0].mxu0
        %v917 = vadd.f32 0.0, %v916
        %v918 = vpop.f32.mrb[0].mxu0
        %v919 = vpop.f32.mrb[0].mxu0
        %v920 = vadd.f32 0.0, %v919
        %v921 = vpop.f32.mrb[0].mxu0
        %922 = vmatprep.mubr.bf16.mxu0 0
        %923 = vmatmul.mubr.bf16.gmra.mrb[0].mxu0 %v577
        %v924 = vpop.f32.mrb[0].mxu0
        %v925 = vadd.f32 0.0, %v924
        %v926 = vpop.f32.mrb[0].mxu0
        %v927 = vpop.f32.mrb[0].mxu0
        %v928 = vadd.f32 0.0, %v927
        %v929 = vpop.f32.mrb[0].mxu0
        %930 = vdwg.mxu0
        %v933 = vunpack.c.l.s4 1966171168
        %v934 = vunpack.c.0.s8 %v933
        %v935 = vlaneseq
        %v936 = vshrl.u32 %v935, 7
        %v937 = vsub.s32 %v934, %v936
        %v938 = vrot.slane %v477, %v937
        %v939 = vcombine.high %v938, %v938
        %v941 = vunpack.c.l.s4 1966171168
        %v942 = vunpack.c.0.s8 %v941
        %v943 = vlaneseq
        %v944 = vshrl.u32 %v943, 7
        %v945 = vsub.s32 %v942, %v944
        %v946 = vrot.slane %v938, %v945
        %v948 = vunpack.c.l.s4 1966171168
        %v949 = vunpack.c.0.s8 %v948
        %v950 = vlaneseq
        %v951 = vshrl.u32 %v950, 7
        %v952 = vsub.s32 %v949, %v951
        %v953 = vrot.slane %v939, %v952
        %v954 = vcombine.high %v946, %v946
        %v955 = vcombine.high %v953, %v953
        %v956 = vlaneseq
        %v957 = vshrl.u32 %v956, 7
        %v958 = vsub.s32 0, %v957
        %v959 = vrot.slane %v946, %v958
        %v960 = vlaneseq
        %v961 = vshrl.u32 %v960, 7
        %v962 = vsub.s32 0, %v961
        %v963 = vrot.slane %v953, %v962
        %v964 = vlaneseq
        %v965 = vshrl.u32 %v964, 7
        %v966 = vsub.s32 0, %v965
        %v967 = vrot.slane %v954, %v966
        %v968 = vlaneseq
        %v969 = vshrl.u32 %v968, 7
        %v970 = vsub.s32 0, %v969
        %v971 = vrot.slane %v955, %v970
        %v976 = vadd.f32 %v677, %v959
        %v977 = vadd.f32 %v680, %v959
        %v978 = vadd.f32 %v685, %v959
        %v979 = vadd.f32 %v688, %v959
        %v980 = vadd.f32 %v693, %v959
        %v981 = vadd.f32 %v696, %v959
        %v982 = vadd.f32 %v701, %v959
        %v983 = vadd.f32 %v704, %v959
        %v984 = vadd.f32 %v709, %v959
        %v985 = vadd.f32 %v712, %v959
        %v986 = vadd.f32 %v717, %v959
        %v987 = vadd.f32 %v720, %v959
        %v988 = vadd.f32 %v725, %v959
        %v989 = vadd.f32 %v728, %v959
        %v990 = vadd.f32 %v733, %v959
        %v991 = vadd.f32 %v736, %v959
        %v992 = vadd.f32 %v741, %v963
        %v993 = vadd.f32 %v744, %v963
        %v994 = vadd.f32 %v749, %v963
        %v995 = vadd.f32 %v752, %v963
        %v996 = vadd.f32 %v757, %v963
        %v997 = vadd.f32 %v760, %v963
        %v998 = vadd.f32 %v765, %v963
        %v999 = vadd.f32 %v768, %v963
        %v1000 = vadd.f32 %v773, %v963
        %v1001 = vadd.f32 %v776, %v963
        %v1002 = vadd.f32 %v781, %v963
        %v1003 = vadd.f32 %v784, %v963
        %v1004 = vadd.f32 %v789, %v963
        %v1005 = vadd.f32 %v792, %v963
        %v1006 = vadd.f32 %v797, %v963
        %v1007 = vadd.f32 %v800, %v963
        %v1008 = vadd.f32 %v805, %v967
        %v1009 = vadd.f32 %v808, %v967
        %v1010 = vadd.f32 %v813, %v967
        %v1011 = vadd.f32 %v816, %v967
        %v1012 = vadd.f32 %v821, %v967
        %v1013 = vadd.f32 %v824, %v967
        %v1014 = vadd.f32 %v829, %v967
        %v1015 = vadd.f32 %v832, %v967
        %v1016 = vadd.f32 %v837, %v967
        %v1017 = vadd.f32 %v840, %v967
        %v1018 = vadd.f32 %v845, %v967
        %v1019 = vadd.f32 %v848, %v967
        %v1020 = vadd.f32 %v853, %v967
        %v1021 = vadd.f32 %v856, %v967
        %v1022 = vadd.f32 %v861, %v967
        %v1023 = vadd.f32 %v864, %v967
        %v1024 = vadd.f32 %v869, %v971
        %v1025 = vadd.f32 %v872, %v971
        %v1026 = vadd.f32 %v877, %v971
        %v1027 = vadd.f32 %v880, %v971
        %v1028 = vadd.f32 %v885, %v971
        %v1029 = vadd.f32 %v888, %v971
        %v1030 = vadd.f32 %v893, %v971
        %v1031 = vadd.f32 %v896, %v971
        %v1032 = vadd.f32 %v901, %v971
        %v1033 = vadd.f32 %v904, %v971
        %v1034 = vadd.f32 %v909, %v971
        %v1035 = vadd.f32 %v912, %v971
        %v1036 = vadd.f32 %v917, %v971
        %v1037 = vadd.f32 %v920, %v971
        %v1038 = vadd.f32 %v925, %v971
        %v1039 = vadd.f32 %v928, %v971
        %v1040 = vmax.f32 %v976, 0.0
        %v1041 = vmax.f32 %v977, 0.0
        %v1042 = vmax.f32 %v978, 0.0
        %v1043 = vmax.f32 %v979, 0.0
        %v1044 = vmax.f32 %v980, 0.0
        %v1045 = vmax.f32 %v981, 0.0
        %v1046 = vmax.f32 %v982, 0.0
        %v1047 = vmax.f32 %v983, 0.0
        %v1048 = vmax.f32 %v984, 0.0
        %v1049 = vmax.f32 %v985, 0.0
        %v1050 = vmax.f32 %v986, 0.0
        %v1051 = vmax.f32 %v987, 0.0
        %v1052 = vmax.f32 %v988, 0.0
        %v1053 = vmax.f32 %v989, 0.0
        %v1054 = vmax.f32 %v990, 0.0
        %v1055 = vmax.f32 %v991, 0.0
        %v1056 = vmax.f32 %v992, 0.0
        %v1057 = vmax.f32 %v993, 0.0
        %v1058 = vmax.f32 %v994, 0.0
        %v1059 = vmax.f32 %v995, 0.0
        %v1060 = vmax.f32 %v996, 0.0
        %v1061 = vmax.f32 %v997, 0.0
        %v1062 = vmax.f32 %v998, 0.0
        %v1063 = vmax.f32 %v999, 0.0
        %v1064 = vmax.f32 %v1000, 0.0
        %v1065 = vmax.f32 %v1001, 0.0
        %v1066 = vmax.f32 %v1002, 0.0
        %v1067 = vmax.f32 %v1003, 0.0
        %v1068 = vmax.f32 %v1004, 0.0
        %v1069 = vmax.f32 %v1005, 0.0
        %v1070 = vmax.f32 %v1006, 0.0
        %v1071 = vmax.f32 %v1007, 0.0
        %v1072 = vmax.f32 %v1008, 0.0
        %v1073 = vmax.f32 %v1009, 0.0
        %v1074 = vmax.f32 %v1010, 0.0
        %v1075 = vmax.f32 %v1011, 0.0
        %v1076 = vmax.f32 %v1012, 0.0
        %v1077 = vmax.f32 %v1013, 0.0
        %v1078 = vmax.f32 %v1014, 0.0
        %v1079 = vmax.f32 %v1015, 0.0
        %v1080 = vmax.f32 %v1016, 0.0
        %v1081 = vmax.f32 %v1017, 0.0
        %v1082 = vmax.f32 %v1018, 0.0
        %v1083 = vmax.f32 %v1019, 0.0
        %v1084 = vmax.f32 %v1020, 0.0
        %v1085 = vmax.f32 %v1021, 0.0
        %v1086 = vmax.f32 %v1022, 0.0
        %v1087 = vmax.f32 %v1023, 0.0
        %v1088 = vmax.f32 %v1024, 0.0
        %v1089 = vmax.f32 %v1025, 0.0
        %v1090 = vmax.f32 %v1026, 0.0
        %v1091 = vmax.f32 %v1027, 0.0
        %v1092 = vmax.f32 %v1028, 0.0
        %v1093 = vmax.f32 %v1029, 0.0
        %v1094 = vmax.f32 %v1030, 0.0
        %v1095 = vmax.f32 %v1031, 0.0
        %v1096 = vmax.f32 %v1032, 0.0
        %v1097 = vmax.f32 %v1033, 0.0
        %v1098 = vmax.f32 %v1034, 0.0
        %v1099 = vmax.f32 %v1035, 0.0
        %v1100 = vmax.f32 %v1036, 0.0
        %v1101 = vmax.f32 %v1037, 0.0
        %v1102 = vmax.f32 %v1038, 0.0
        %v1103 = vmax.f32 %v1039, 0.0
        %v1104 = vld [vmem:[%s5] sm:$0x1]
        %v1106 = vlaneseq
        %v1107 = vshrl.u32 %v1106, 7
        %v1108 = vsub.s32 0, %v1107
        %v1109 = vrot.slane %v1104, %v1108
        %v1111 = vmul.f32 %v1040, %v1109
        %v1112 = vmul.f32 %v1041, %v1109
        %v1113 = vmul.f32 %v1042, %v1109
        %v1114 = vmul.f32 %v1043, %v1109
        %v1115 = vmul.f32 %v1044, %v1109
        %v1116 = vmul.f32 %v1045, %v1109
        %v1117 = vmul.f32 %v1046, %v1109
        %v1118 = vmul.f32 %v1047, %v1109
        %v1119 = vmul.f32 %v1048, %v1109
        %v1120 = vmul.f32 %v1049, %v1109
        %v1121 = vmul.f32 %v1050, %v1109
        %v1122 = vmul.f32 %v1051, %v1109
        %v1123 = vmul.f32 %v1052, %v1109
        %v1124 = vmul.f32 %v1053, %v1109
        %v1125 = vmul.f32 %v1054, %v1109
        %v1126 = vmul.f32 %v1055, %v1109
        %v1127 = vmul.f32 %v1056, %v1109
        %v1128 = vmul.f32 %v1057, %v1109
        %v1129 = vmul.f32 %v1058, %v1109
        %v1130 = vmul.f32 %v1059, %v1109
        %v1131 = vmul.f32 %v1060, %v1109
        %v1132 = vmul.f32 %v1061, %v1109
        %v1133 = vmul.f32 %v1062, %v1109
        %v1134 = vmul.f32 %v1063, %v1109
        %v1135 = vmul.f32 %v1064, %v1109
        %v1136 = vmul.f32 %v1065, %v1109
        %v1137 = vmul.f32 %v1066, %v1109
        %v1138 = vmul.f32 %v1067, %v1109
        %v1139 = vmul.f32 %v1068, %v1109
        %v1140 = vmul.f32 %v1069, %v1109
        %v1141 = vmul.f32 %v1070, %v1109
        %v1142 = vmul.f32 %v1071, %v1109
        %v1143 = vmul.f32 %v1072, %v1109
        %v1144 = vmul.f32 %v1073, %v1109
        %v1145 = vmul.f32 %v1074, %v1109
        %v1146 = vmul.f32 %v1075, %v1109
        %v1147 = vmul.f32 %v1076, %v1109
        %v1148 = vmul.f32 %v1077, %v1109
        %v1149 = vmul.f32 %v1078, %v1109
        %v1150 = vmul.f32 %v1079, %v1109
        %v1151 = vmul.f32 %v1080, %v1109
        %v1152 = vmul.f32 %v1081, %v1109
        %v1153 = vmul.f32 %v1082, %v1109
        %v1154 = vmul.f32 %v1083, %v1109
        %v1155 = vmul.f32 %v1084, %v1109
        %v1156 = vmul.f32 %v1085, %v1109
        %v1157 = vmul.f32 %v1086, %v1109
        %v1158 = vmul.f32 %v1087, %v1109
        %v1159 = vmul.f32 %v1088, %v1109
        %v1160 = vmul.f32 %v1089, %v1109
        %v1161 = vmul.f32 %v1090, %v1109
        %v1162 = vmul.f32 %v1091, %v1109
        %v1163 = vmul.f32 %v1092, %v1109
        %v1164 = vmul.f32 %v1093, %v1109
        %v1165 = vmul.f32 %v1094, %v1109
        %v1166 = vmul.f32 %v1095, %v1109
        %v1167 = vmul.f32 %v1096, %v1109
        %v1168 = vmul.f32 %v1097, %v1109
        %v1169 = vmul.f32 %v1098, %v1109
        %v1170 = vmul.f32 %v1099, %v1109
        %v1171 = vmul.f32 %v1100, %v1109
        %v1172 = vmul.f32 %v1101, %v1109
        %v1173 = vmul.f32 %v1102, %v1109
        %v1174 = vmul.f32 %v1103, %v1109
        %1175 = vadd.xlane.f32.xlu0 %v1111
        %v1176 = vpop.xlane.xlu0 %1175
        %1177 = vadd.xlane.f32.xlu0 %v1112
        %v1178 = vpop.xlane.xlu0 %1177
        %1179 = vadd.xlane.f32.xlu0 %v1113
        %v1180 = vpop.xlane.xlu0 %1179
        %1181 = vadd.xlane.f32.xlu0 %v1114
        %v1182 = vpop.xlane.xlu0 %1181
        %1183 = vadd.xlane.f32.xlu0 %v1115
        %v1184 = vpop.xlane.xlu0 %1183
        %1185 = vadd.xlane.f32.xlu0 %v1116
        %v1186 = vpop.xlane.xlu0 %1185
        %1187 = vadd.xlane.f32.xlu0 %v1117
        %v1188 = vpop.xlane.xlu0 %1187
        %1189 = vadd.xlane.f32.xlu0 %v1118
        %v1190 = vpop.xlane.xlu0 %1189
        %1191 = vadd.xlane.f32.xlu0 %v1119
        %v1192 = vpop.xlane.xlu0 %1191
        %1193 = vadd.xlane.f32.xlu0 %v1120
        %v1194 = vpop.xlane.xlu0 %1193
        %1195 = vadd.xlane.f32.xlu0 %v1121
        %v1196 = vpop.xlane.xlu0 %1195
        %1197 = vadd.xlane.f32.xlu0 %v1122
        %v1198 = vpop.xlane.xlu0 %1197
        %1199 = vadd.xlane.f32.xlu0 %v1123
        %v1200 = vpop.xlane.xlu0 %1199
        %1201 = vadd.xlane.f32.xlu0 %v1124
        %v1202 = vpop.xlane.xlu0 %1201
        %1203 = vadd.xlane.f32.xlu0 %v1125
        %v1204 = vpop.xlane.xlu0 %1203
        %1205 = vadd.xlane.f32.xlu0 %v1126
        %v1206 = vpop.xlane.xlu0 %1205
        %1207 = vadd.xlane.f32.xlu0 %v1127
        %v1208 = vpop.xlane.xlu0 %1207
        %1209 = vadd.xlane.f32.xlu0 %v1128
        %v1210 = vpop.xlane.xlu0 %1209
        %1211 = vadd.xlane.f32.xlu0 %v1129
        %v1212 = vpop.xlane.xlu0 %1211
        %1213 = vadd.xlane.f32.xlu0 %v1130
        %v1214 = vpop.xlane.xlu0 %1213
        %1215 = vadd.xlane.f32.xlu0 %v1131
        %v1216 = vpop.xlane.xlu0 %1215
        %1217 = vadd.xlane.f32.xlu0 %v1132
        %v1218 = vpop.xlane.xlu0 %1217
        %1219 = vadd.xlane.f32.xlu0 %v1133
        %v1220 = vpop.xlane.xlu0 %1219
        %1221 = vadd.xlane.f32.xlu0 %v1134
        %v1222 = vpop.xlane.xlu0 %1221
        %1223 = vadd.xlane.f32.xlu0 %v1135
        %v1224 = vpop.xlane.xlu0 %1223
        %1225 = vadd.xlane.f32.xlu0 %v1136
        %v1226 = vpop.xlane.xlu0 %1225
        %1227 = vadd.xlane.f32.xlu0 %v1137
        %v1228 = vpop.xlane.xlu0 %1227
        %1229 = vadd.xlane.f32.xlu0 %v1138
        %v1230 = vpop.xlane.xlu0 %1229
        %1231 = vadd.xlane.f32.xlu0 %v1139
        %v1232 = vpop.xlane.xlu0 %1231
        %1233 = vadd.xlane.f32.xlu0 %v1140
        %v1234 = vpop.xlane.xlu0 %1233
        %1235 = vadd.xlane.f32.xlu0 %v1141
        %v1236 = vpop.xlane.xlu0 %1235
        %1237 = vadd.xlane.f32.xlu0 %v1142
        %v1238 = vpop.xlane.xlu0 %1237
        %1239 = vadd.xlane.f32.xlu0 %v1143
        %v1240 = vpop.xlane.xlu0 %1239
        %1241 = vadd.xlane.f32.xlu0 %v1144
        %v1242 = vpop.xlane.xlu0 %1241
        %1243 = vadd.xlane.f32.xlu0 %v1145
        %v1244 = vpop.xlane.xlu0 %1243
        %1245 = vadd.xlane.f32.xlu0 %v1146
        %v1246 = vpop.xlane.xlu0 %1245
        %1247 = vadd.xlane.f32.xlu0 %v1147
        %v1248 = vpop.xlane.xlu0 %1247
        %1249 = vadd.xlane.f32.xlu0 %v1148
        %v1250 = vpop.xlane.xlu0 %1249
        %1251 = vadd.xlane.f32.xlu0 %v1149
        %v1252 = vpop.xlane.xlu0 %1251
        %1253 = vadd.xlane.f32.xlu0 %v1150
        %v1254 = vpop.xlane.xlu0 %1253
        %1255 = vadd.xlane.f32.xlu0 %v1151
        %v1256 = vpop.xlane.xlu0 %1255
        %1257 = vadd.xlane.f32.xlu0 %v1152
        %v1258 = vpop.xlane.xlu0 %1257
        %1259 = vadd.xlane.f32.xlu0 %v1153
        %v1260 = vpop.xlane.xlu0 %1259
        %1261 = vadd.xlane.f32.xlu0 %v1154
        %v1262 = vpop.xlane.xlu0 %1261
        %1263 = vadd.xlane.f32.xlu0 %v1155
        %v1264 = vpop.xlane.xlu0 %1263
        %1265 = vadd.xlane.f32.xlu0 %v1156
        %v1266 = vpop.xlane.xlu0 %1265
        %1267 = vadd.xlane.f32.xlu0 %v1157
        %v1268 = vpop.xlane.xlu0 %1267
        %1269 = vadd.xlane.f32.xlu0 %v1158
        %v1270 = vpop.xlane.xlu0 %1269
        %1271 = vadd.xlane.f32.xlu0 %v1159
        %v1272 = vpop.xlane.xlu0 %1271
        %1273 = vadd.xlane.f32.xlu0 %v1160
        %v1274 = vpop.xlane.xlu0 %1273
        %1275 = vadd.xlane.f32.xlu0 %v1161
        %v1276 = vpop.xlane.xlu0 %1275
        %1277 = vadd.xlane.f32.xlu0 %v1162
        %v1278 = vpop.xlane.xlu0 %1277
        %1279 = vadd.xlane.f32.xlu0 %v1163
        %v1280 = vpop.xlane.xlu0 %1279
        %1281 = vadd.xlane.f32.xlu0 %v1164
        %v1282 = vpop.xlane.xlu0 %1281
        %1283 = vadd.xlane.f32.xlu0 %v1165
        %v1284 = vpop.xlane.xlu0 %1283
        %1285 = vadd.xlane.f32.xlu0 %v1166
        %v1286 = vpop.xlane.xlu0 %1285
        %1287 = vadd.xlane.f32.xlu0 %v1167
        %v1288 = vpop.xlane.xlu0 %1287
        %1289 = vadd.xlane.f32.xlu0 %v1168
        %v1290 = vpop.xlane.xlu0 %1289
        %1291 = vadd.xlane.f32.xlu0 %v1169
        %v1292 = vpop.xlane.xlu0 %1291
        %1293 = vadd.xlane.f32.xlu0 %v1170
        %v1294 = vpop.xlane.xlu0 %1293
        %1295 = vadd.xlane.f32.xlu0 %v1171
        %v1296 = vpop.xlane.xlu0 %1295
        %1297 = vadd.xlane.f32.xlu0 %v1172
        %v1298 = vpop.xlane.xlu0 %1297
        %1299 = vadd.xlane.f32.xlu0 %v1173
        %v1300 = vpop.xlane.xlu0 %1299
        %1301 = vadd.xlane.f32.xlu0 %v1174
        %v1302 = vpop.xlane.xlu0 %1301
        %v1367 = vlaneseq
        %v1368 = vand.u32 %v1367, 127
        %v1369 = vlaneseq
        %v1370 = vshrl.u32 %v1369, 7
        %v1371 = vsub.s32 %v1368, %v1370
        %v1372 = vrot.slane %v1176, %v1371
        %v1373 = vadd.s32 %v1368, 4294967288
        %v1374 = vlaneseq
        %v1375 = vshrl.u32 %v1374, 7
        %v1376 = vsub.s32 %v1373, %v1375
        %v1377 = vrot.slane %v1178, %v1376
        %vm1378 = vcmask 130112
        %v1379 = vsel %vm1378, %v1377, %v1372
        %v1380 = vadd.s32 %v1368, 4294967280
        %v1381 = vlaneseq
        %v1382 = vshrl.u32 %v1381, 7
        %v1383 = vsub.s32 %v1380, %v1382
        %v1384 = vrot.slane %v1180, %v1383
        %vm1385 = vcmask 195712
        %v1386 = vsel %vm1385, %v1384, %v1379
        %v1387 = vadd.s32 %v1368, 4294967272
        %v1388 = vlaneseq
        %v1389 = vshrl.u32 %v1388, 7
        %v1390 = vsub.s32 %v1387, %v1389
        %v1391 = vrot.slane %v1182, %v1390
        %vm1392 = vcmask 261312
        %v1393 = vsel %vm1392, %v1391, %v1386
        %v1394 = vadd.s32 %v1368, 4294967264
        %v1395 = vlaneseq
        %v1396 = vshrl.u32 %v1395, 7
        %v1397 = vsub.s32 %v1394, %v1396
        %v1398 = vrot.slane %v1184, %v1397
        %vm1399 = vcmask 326912
        %v1400 = vsel %vm1399, %v1398, %v1393
        %v1401 = vadd.s32 %v1368, 4294967256
        %v1402 = vlaneseq
        %v1403 = vshrl.u32 %v1402, 7
        %v1404 = vsub.s32 %v1401, %v1403
        %v1405 = vrot.slane %v1186, %v1404
        %vm1406 = vcmask 392512
        %v1407 = vsel %vm1406, %v1405, %v1400
        %v1408 = vadd.s32 %v1368, 4294967248
        %v1409 = vlaneseq
        %v1410 = vshrl.u32 %v1409, 7
        %v1411 = vsub.s32 %v1408, %v1410
        %v1412 = vrot.slane %v1188, %v1411
        %vm1413 = vcmask 458112
        %v1414 = vsel %vm1413, %v1412, %v1407
        %v1415 = vadd.s32 %v1368, 4294967240
        %v1416 = vlaneseq
        %v1417 = vshrl.u32 %v1416, 7
        %v1418 = vsub.s32 %v1415, %v1417
        %v1419 = vrot.slane %v1190, %v1418
        %vm1420 = vcmask 523712
        %v1421 = vsel %vm1420, %v1419, %v1414
        %v1422 = vadd.s32 %v1368, 4294967232
        %v1423 = vlaneseq
        %v1424 = vshrl.u32 %v1423, 7
        %v1425 = vsub.s32 %v1422, %v1424
        %v1426 = vrot.slane %v1192, %v1425
        %vm1427 = vcmask 589312
        %v1428 = vsel %vm1427, %v1426, %v1421
        %v1429 = vadd.s32 %v1368, 4294967224
        %v1430 = vlaneseq
        %v1431 = vshrl.u32 %v1430, 7
        %v1432 = vsub.s32 %v1429, %v1431
        %v1433 = vrot.slane %v1194, %v1432
        %vm1434 = vcmask 654912
        %v1435 = vsel %vm1434, %v1433, %v1428
        %v1436 = vadd.s32 %v1368, 4294967216
        %v1437 = vlaneseq
        %v1438 = vshrl.u32 %v1437, 7
        %v1439 = vsub.s32 %v1436, %v1438
        %v1440 = vrot.slane %v1196, %v1439
        %vm1441 = vcmask 720512
        %v1442 = vsel %vm1441, %v1440, %v1435
        %v1443 = vadd.s32 %v1368, 4294967208
        %v1444 = vlaneseq
        %v1445 = vshrl.u32 %v1444, 7
        %v1446 = vsub.s32 %v1443, %v1445
        %v1447 = vrot.slane %v1198, %v1446
        %vm1448 = vcmask 786112
        %v1449 = vsel %vm1448, %v1447, %v1442
        %v1450 = vadd.s32 %v1368, 4294967200
        %v1451 = vlaneseq
        %v1452 = vshrl.u32 %v1451, 7
        %v1453 = vsub.s32 %v1450, %v1452
        %v1454 = vrot.slane %v1200, %v1453
        %vm1455 = vcmask 851712
        %v1456 = vsel %vm1455, %v1454, %v1449
        %v1457 = vadd.s32 %v1368, 4294967192
        %v1458 = vlaneseq
        %v1459 = vshrl.u32 %v1458, 7
        %v1460 = vsub.s32 %v1457, %v1459
        %v1461 = vrot.slane %v1202, %v1460
        %vm1462 = vcmask 917312
        %v1463 = vsel %vm1462, %v1461, %v1456
        %v1464 = vadd.s32 %v1368, 4294967184
        %v1465 = vlaneseq
        %v1466 = vshrl.u32 %v1465, 7
        %v1467 = vsub.s32 %v1464, %v1466
        %v1468 = vrot.slane %v1204, %v1467
        %vm1469 = vcmask 982912
        %v1470 = vsel %vm1469, %v1468, %v1463
        %v1471 = vadd.s32 %v1368, 4294967176
        %v1472 = vlaneseq
        %v1473 = vshrl.u32 %v1472, 7
        %v1474 = vsub.s32 %v1471, %v1473
        %v1475 = vrot.slane %v1206, %v1474
        %vm1476 = vcmask 1048512
        %v1477 = vsel %vm1476, %v1475, %v1470
        %v1478 = vlaneseq
        %v1479 = vshrl.u32 %v1478, 7
        %v1480 = vsub.s32 %v1368, %v1479
        %v1481 = vrot.slane %v1208, %v1480
        %v1482 = vlaneseq
        %v1483 = vshrl.u32 %v1482, 7
        %v1484 = vsub.s32 %v1373, %v1483
        %v1485 = vrot.slane %v1210, %v1484
        %v1486 = vsel %vm1378, %v1485, %v1481
        %v1487 = vlaneseq
        %v1488 = vshrl.u32 %v1487, 7
        %v1489 = vsub.s32 %v1380, %v1488
        %v1490 = vrot.slane %v1212, %v1489
        %v1491 = vsel %vm1385, %v1490, %v1486
        %v1492 = vlaneseq
        %v1493 = vshrl.u32 %v1492, 7
        %v1494 = vsub.s32 %v1387, %v1493
        %v1495 = vrot.slane %v1214, %v1494
        %v1496 = vsel %vm1392, %v1495, %v1491
        %v1497 = vlaneseq
        %v1498 = vshrl.u32 %v1497, 7
        %v1499 = vsub.s32 %v1394, %v1498
        %v1500 = vrot.slane %v1216, %v1499
        %v1501 = vsel %vm1399, %v1500, %v1496
        %v1502 = vlaneseq
        %v1503 = vshrl.u32 %v1502, 7
        %v1504 = vsub.s32 %v1401, %v1503
        %v1505 = vrot.slane %v1218, %v1504
        %v1506 = vsel %vm1406, %v1505, %v1501
        %v1507 = vlaneseq
        %v1508 = vshrl.u32 %v1507, 7
        %v1509 = vsub.s32 %v1408, %v1508
        %v1510 = vrot.slane %v1220, %v1509
        %v1511 = vsel %vm1413, %v1510, %v1506
        %v1512 = vlaneseq
        %v1513 = vshrl.u32 %v1512, 7
        %v1514 = vsub.s32 %v1415, %v1513
        %v1515 = vrot.slane %v1222, %v1514
        %v1516 = vsel %vm1420, %v1515, %v1511
        %v1517 = vlaneseq
        %v1518 = vshrl.u32 %v1517, 7
        %v1519 = vsub.s32 %v1422, %v1518
        %v1520 = vrot.slane %v1224, %v1519
        %v1521 = vsel %vm1427, %v1520, %v1516
        %v1522 = vlaneseq
        %v1523 = vshrl.u32 %v1522, 7
        %v1524 = vsub.s32 %v1429, %v1523
        %v1525 = vrot.slane %v1226, %v1524
        %v1526 = vsel %vm1434, %v1525, %v1521
        %v1527 = vlaneseq
        %v1528 = vshrl.u32 %v1527, 7
        %v1529 = vsub.s32 %v1436, %v1528
        %v1530 = vrot.slane %v1228, %v1529
        %v1531 = vsel %vm1441, %v1530, %v1526
        %v1532 = vlaneseq
        %v1533 = vshrl.u32 %v1532, 7
        %v1534 = vsub.s32 %v1443, %v1533
        %v1535 = vrot.slane %v1230, %v1534
        %v1536 = vsel %vm1448, %v1535, %v1531
        %v1537 = vlaneseq
        %v1538 = vshrl.u32 %v1537, 7
        %v1539 = vsub.s32 %v1450, %v1538
        %v1540 = vrot.slane %v1232, %v1539
        %v1541 = vsel %vm1455, %v1540, %v1536
        %v1542 = vlaneseq
        %v1543 = vshrl.u32 %v1542, 7
        %v1544 = vsub.s32 %v1457, %v1543
        %v1545 = vrot.slane %v1234, %v1544
        %v1546 = vsel %vm1462, %v1545, %v1541
        %v1547 = vlaneseq
        %v1548 = vshrl.u32 %v1547, 7
        %v1549 = vsub.s32 %v1464, %v1548
        %v1550 = vrot.slane %v1236, %v1549
        %v1551 = vsel %vm1469, %v1550, %v1546
        %v1552 = vlaneseq
        %v1553 = vshrl.u32 %v1552, 7
        %v1554 = vsub.s32 %v1471, %v1553
        %v1555 = vrot.slane %v1238, %v1554
        %v1556 = vsel %vm1476, %v1555, %v1551
        %v1557 = vlaneseq
        %v1558 = vshrl.u32 %v1557, 7
        %v1559 = vsub.s32 %v1368, %v1558
        %v1560 = vrot.slane %v1240, %v1559
        %v1561 = vlaneseq
        %v1562 = vshrl.u32 %v1561, 7
        %v1563 = vsub.s32 %v1373, %v1562
        %v1564 = vrot.slane %v1242, %v1563
        %v1565 = vsel %vm1378, %v1564, %v1560
        %v1566 = vlaneseq
        %v1567 = vshrl.u32 %v1566, 7
        %v1568 = vsub.s32 %v1380, %v1567
        %v1569 = vrot.slane %v1244, %v1568
        %v1570 = vsel %vm1385, %v1569, %v1565
        %v1571 = vlaneseq
        %v1572 = vshrl.u32 %v1571, 7
        %v1573 = vsub.s32 %v1387, %v1572
        %v1574 = vrot.slane %v1246, %v1573
        %v1575 = vsel %vm1392, %v1574, %v1570
        %v1576 = vlaneseq
        %v1577 = vshrl.u32 %v1576, 7
        %v1578 = vsub.s32 %v1394, %v1577
        %v1579 = vrot.slane %v1248, %v1578
        %v1580 = vsel %vm1399, %v1579, %v1575
        %v1581 = vlaneseq
        %v1582 = vshrl.u32 %v1581, 7
        %v1583 = vsub.s32 %v1401, %v1582
        %v1584 = vrot.slane %v1250, %v1583
        %v1585 = vsel %vm1406, %v1584, %v1580
        %v1586 = vlaneseq
        %v1587 = vshrl.u32 %v1586, 7
        %v1588 = vsub.s32 %v1408, %v1587
        %v1589 = vrot.slane %v1252, %v1588
        %v1590 = vsel %vm1413, %v1589, %v1585
        %v1591 = vlaneseq
        %v1592 = vshrl.u32 %v1591, 7
        %v1593 = vsub.s32 %v1415, %v1592
        %v1594 = vrot.slane %v1254, %v1593
        %v1595 = vsel %vm1420, %v1594, %v1590
        %v1596 = vlaneseq
        %v1597 = vshrl.u32 %v1596, 7
        %v1598 = vsub.s32 %v1422, %v1597
        %v1599 = vrot.slane %v1256, %v1598
        %v1600 = vsel %vm1427, %v1599, %v1595
        %v1601 = vlaneseq
        %v1602 = vshrl.u32 %v1601, 7
        %v1603 = vsub.s32 %v1429, %v1602
        %v1604 = vrot.slane %v1258, %v1603
        %v1605 = vsel %vm1434, %v1604, %v1600
        %v1606 = vlaneseq
        %v1607 = vshrl.u32 %v1606, 7
        %v1608 = vsub.s32 %v1436, %v1607
        %v1609 = vrot.slane %v1260, %v1608
        %v1610 = vsel %vm1441, %v1609, %v1605
        %v1611 = vlaneseq
        %v1612 = vshrl.u32 %v1611, 7
        %v1613 = vsub.s32 %v1443, %v1612
        %v1614 = vrot.slane %v1262, %v1613
        %v1615 = vsel %vm1448, %v1614, %v1610
        %v1616 = vlaneseq
        %v1617 = vshrl.u32 %v1616, 7
        %v1618 = vsub.s32 %v1450, %v1617
        %v1619 = vrot.slane %v1264, %v1618
        %v1620 = vsel %vm1455, %v1619, %v1615
        %v1621 = vlaneseq
        %v1622 = vshrl.u32 %v1621, 7
        %v1623 = vsub.s32 %v1457, %v1622
        %v1624 = vrot.slane %v1266, %v1623
        %v1625 = vsel %vm1462, %v1624, %v1620
        %v1626 = vlaneseq
        %v1627 = vshrl.u32 %v1626, 7
        %v1628 = vsub.s32 %v1464, %v1627
        %v1629 = vrot.slane %v1268, %v1628
        %v1630 = vsel %vm1469, %v1629, %v1625
        %v1631 = vlaneseq
        %v1632 = vshrl.u32 %v1631, 7
        %v1633 = vsub.s32 %v1471, %v1632
        %v1634 = vrot.slane %v1270, %v1633
        %v1635 = vsel %vm1476, %v1634, %v1630
        %v1636 = vlaneseq
        %v1637 = vshrl.u32 %v1636, 7
        %v1638 = vsub.s32 %v1368, %v1637
        %v1639 = vrot.slane %v1272, %v1638
        %v1640 = vlaneseq
        %v1641 = vshrl.u32 %v1640, 7
        %v1642 = vsub.s32 %v1373, %v1641
        %v1643 = vrot.slane %v1274, %v1642
        %v1644 = vsel %vm1378, %v1643, %v1639
        %v1645 = vlaneseq
        %v1646 = vshrl.u32 %v1645, 7
        %v1647 = vsub.s32 %v1380, %v1646
        %v1648 = vrot.slane %v1276, %v1647
        %v1649 = vsel %vm1385, %v1648, %v1644
        %v1650 = vlaneseq
        %v1651 = vshrl.u32 %v1650, 7
        %v1652 = vsub.s32 %v1387, %v1651
        %v1653 = vrot.slane %v1278, %v1652
        %v1654 = vsel %vm1392, %v1653, %v1649
        %v1655 = vlaneseq
        %v1656 = vshrl.u32 %v1655, 7
        %v1657 = vsub.s32 %v1394, %v1656
        %v1658 = vrot.slane %v1280, %v1657
        %v1659 = vsel %vm1399, %v1658, %v1654
        %v1660 = vlaneseq
        %v1661 = vshrl.u32 %v1660, 7
        %v1662 = vsub.s32 %v1401, %v1661
        %v1663 = vrot.slane %v1282, %v1662
        %v1664 = vsel %vm1406, %v1663, %v1659
        %v1665 = vlaneseq
        %v1666 = vshrl.u32 %v1665, 7
        %v1667 = vsub.s32 %v1408, %v1666
        %v1668 = vrot.slane %v1284, %v1667
        %v1669 = vsel %vm1413, %v1668, %v1664
        %v1670 = vlaneseq
        %v1671 = vshrl.u32 %v1670, 7
        %v1672 = vsub.s32 %v1415, %v1671
        %v1673 = vrot.slane %v1286, %v1672
        %v1674 = vsel %vm1420, %v1673, %v1669
        %v1675 = vlaneseq
        %v1676 = vshrl.u32 %v1675, 7
        %v1677 = vsub.s32 %v1422, %v1676
        %v1678 = vrot.slane %v1288, %v1677
        %v1679 = vsel %vm1427, %v1678, %v1674
        %v1680 = vlaneseq
        %v1681 = vshrl.u32 %v1680, 7
        %v1682 = vsub.s32 %v1429, %v1681
        %v1683 = vrot.slane %v1290, %v1682
        %v1684 = vsel %vm1434, %v1683, %v1679
        %v1685 = vlaneseq
        %v1686 = vshrl.u32 %v1685, 7
        %v1687 = vsub.s32 %v1436, %v1686
        %v1688 = vrot.slane %v1292, %v1687
        %v1689 = vsel %vm1441, %v1688, %v1684
        %v1690 = vlaneseq
        %v1691 = vshrl.u32 %v1690, 7
        %v1692 = vsub.s32 %v1443, %v1691
        %v1693 = vrot.slane %v1294, %v1692
        %v1694 = vsel %vm1448, %v1693, %v1689
        %v1695 = vlaneseq
        %v1696 = vshrl.u32 %v1695, 7
        %v1697 = vsub.s32 %v1450, %v1696
        %v1698 = vrot.slane %v1296, %v1697
        %v1699 = vsel %vm1455, %v1698, %v1694
        %v1700 = vlaneseq
        %v1701 = vshrl.u32 %v1700, 7
        %v1702 = vsub.s32 %v1457, %v1701
        %v1703 = vrot.slane %v1298, %v1702
        %v1704 = vsel %vm1462, %v1703, %v1699
        %v1705 = vlaneseq
        %v1706 = vshrl.u32 %v1705, 7
        %v1707 = vsub.s32 %v1464, %v1706
        %v1708 = vrot.slane %v1300, %v1707
        %v1709 = vsel %vm1469, %v1708, %v1704
        %v1710 = vlaneseq
        %v1711 = vshrl.u32 %v1710, 7
        %v1712 = vsub.s32 %v1471, %v1711
        %v1713 = vrot.slane %v1302, %v1712
        %v1714 = vsel %vm1476, %v1713, %v1709
        %v1715 = vsel %vm384, %v1556, %v1477
        %v1716 = vsel %vm387, %v1635, %v1715
        %v1717 = vsel %vm390, %v1714, %v1716
        %vm1719 = vcmask 1043456
        %v1720 = vsel %vm1719, %v1717, -inf
        %1721 = vmax.xlane.f32.xlu0 %v1720
        %v1722 = vpop.xlane.xlu0 %1721
        %v1724 = vlaneseq
        %v1725 = vshrl.u32 %v1724, 7
        %v1726 = vsub.s32 0, %v1725
        %v1727 = vrot.slane %v1722, %v1726
        %v1728 = vlaneseq
        %v1729 = vshrl.u32 %v1728, 7
        %v1730 = vsub.s32 1, %v1729
        %v1731 = vrot.slane %v1722, %v1730
        %v1732 = vlaneseq
        %v1733 = vshrl.u32 %v1732, 7
        %v1734 = vsub.s32 2, %v1733
        %v1735 = vrot.slane %v1722, %v1734
        %v1736 = vlaneseq
        %v1737 = vshrl.u32 %v1736, 7
        %v1738 = vsub.s32 3, %v1737
        %v1739 = vrot.slane %v1722, %v1738
        %v1744 = vsub.f32 %v1176, %v1727
        %v1745 = vsub.f32 %v1178, %v1727
        %v1746 = vsub.f32 %v1180, %v1727
        %v1747 = vsub.f32 %v1182, %v1727
        %v1748 = vsub.f32 %v1184, %v1727
        %v1749 = vsub.f32 %v1186, %v1727
        %v1750 = vsub.f32 %v1188, %v1727
        %v1751 = vsub.f32 %v1190, %v1727
        %v1752 = vsub.f32 %v1192, %v1727
        %v1753 = vsub.f32 %v1194, %v1727
        %v1754 = vsub.f32 %v1196, %v1727
        %v1755 = vsub.f32 %v1198, %v1727
        %v1756 = vsub.f32 %v1200, %v1727
        %v1757 = vsub.f32 %v1202, %v1727
        %v1758 = vsub.f32 %v1204, %v1727
        %v1759 = vsub.f32 %v1206, %v1727
        %v1760 = vsub.f32 %v1208, %v1731
        %v1761 = vsub.f32 %v1210, %v1731
        %v1762 = vsub.f32 %v1212, %v1731
        %v1763 = vsub.f32 %v1214, %v1731
        %v1764 = vsub.f32 %v1216, %v1731
        %v1765 = vsub.f32 %v1218, %v1731
        %v1766 = vsub.f32 %v1220, %v1731
        %v1767 = vsub.f32 %v1222, %v1731
        %v1768 = vsub.f32 %v1224, %v1731
        %v1769 = vsub.f32 %v1226, %v1731
        %v1770 = vsub.f32 %v1228, %v1731
        %v1771 = vsub.f32 %v1230, %v1731
        %v1772 = vsub.f32 %v1232, %v1731
        %v1773 = vsub.f32 %v1234, %v1731
        %v1774 = vsub.f32 %v1236, %v1731
        %v1775 = vsub.f32 %v1238, %v1731
        %v1776 = vsub.f32 %v1240, %v1735
        %v1777 = vsub.f32 %v1242, %v1735
        %v1778 = vsub.f32 %v1244, %v1735
        %v1779 = vsub.f32 %v1246, %v1735
        %v1780 = vsub.f32 %v1248, %v1735
        %v1781 = vsub.f32 %v1250, %v1735
        %v1782 = vsub.f32 %v1252, %v1735
        %v1783 = vsub.f32 %v1254, %v1735
        %v1784 = vsub.f32 %v1256, %v1735
        %v1785 = vsub.f32 %v1258, %v1735
        %v1786 = vsub.f32 %v1260, %v1735
        %v1787 = vsub.f32 %v1262, %v1735
        %v1788 = vsub.f32 %v1264, %v1735
        %v1789 = vsub.f32 %v1266, %v1735
        %v1790 = vsub.f32 %v1268, %v1735
        %v1791 = vsub.f32 %v1270, %v1735
        %v1792 = vsub.f32 %v1272, %v1739
        %v1793 = vsub.f32 %v1274, %v1739
        %v1794 = vsub.f32 %v1276, %v1739
        %v1795 = vsub.f32 %v1278, %v1739
        %v1796 = vsub.f32 %v1280, %v1739
        %v1797 = vsub.f32 %v1282, %v1739
        %v1798 = vsub.f32 %v1284, %v1739
        %v1799 = vsub.f32 %v1286, %v1739
        %v1800 = vsub.f32 %v1288, %v1739
        %v1801 = vsub.f32 %v1290, %v1739
        %v1802 = vsub.f32 %v1292, %v1739
        %v1803 = vsub.f32 %v1294, %v1739
        %v1804 = vsub.f32 %v1296, %v1739
        %v1805 = vsub.f32 %v1298, %v1739
        %v1806 = vsub.f32 %v1300, %v1739
        %v1807 = vsub.f32 %v1302, %v1739
        %v1808 = vmul.f32 %v1744, 1.442695
        %v1809 = vpow.pop %v1808
        %v1810 = vmul.f32 %v1745, 1.442695
        %v1811 = vpow.pop %v1810
        %v1812 = vmul.f32 %v1746, 1.442695
        %v1813 = vpow.pop %v1812
        %v1814 = vmul.f32 %v1747, 1.442695
        %v1815 = vpow.pop %v1814
        %v1816 = vmul.f32 %v1748, 1.442695
        %v1817 = vpow.pop %v1816
        %v1818 = vmul.f32 %v1749, 1.442695
        %v1819 = vpow.pop %v1818
        %v1820 = vmul.f32 %v1750, 1.442695
        %v1821 = vpow.pop %v1820
        %v1822 = vmul.f32 %v1751, 1.442695
        %v1823 = vpow.pop %v1822
        %v1824 = vmul.f32 %v1752, 1.442695
        %v1825 = vpow.pop %v1824
        %v1826 = vmul.f32 %v1753, 1.442695
        %v1827 = vpow.pop %v1826
        %v1828 = vmul.f32 %v1754, 1.442695
        %v1829 = vpow.pop %v1828
        %v1830 = vmul.f32 %v1755, 1.442695
        %v1831 = vpow.pop %v1830
        %v1832 = vmul.f32 %v1756, 1.442695
        %v1833 = vpow.pop %v1832
        %v1834 = vmul.f32 %v1757, 1.442695
        %v1835 = vpow.pop %v1834
        %v1836 = vmul.f32 %v1758, 1.442695
        %v1837 = vpow.pop %v1836
        %v1838 = vmul.f32 %v1759, 1.442695
        %v1839 = vpow.pop %v1838
        %v1840 = vmul.f32 %v1760, 1.442695
        %v1841 = vpow.pop %v1840
        %v1842 = vmul.f32 %v1761, 1.442695
        %v1843 = vpow.pop %v1842
        %v1844 = vmul.f32 %v1762, 1.442695
        %v1845 = vpow.pop %v1844
        %v1846 = vmul.f32 %v1763, 1.442695
        %v1847 = vpow.pop %v1846
        %v1848 = vmul.f32 %v1764, 1.442695
        %v1849 = vpow.pop %v1848
        %v1850 = vmul.f32 %v1765, 1.442695
        %v1851 = vpow.pop %v1850
        %v1852 = vmul.f32 %v1766, 1.442695
        %v1853 = vpow.pop %v1852
        %v1854 = vmul.f32 %v1767, 1.442695
        %v1855 = vpow.pop %v1854
        %v1856 = vmul.f32 %v1768, 1.442695
        %v1857 = vpow.pop %v1856
        %v1858 = vmul.f32 %v1769, 1.442695
        %v1859 = vpow.pop %v1858
        %v1860 = vmul.f32 %v1770, 1.442695
        %v1861 = vpow.pop %v1860
        %v1862 = vmul.f32 %v1771, 1.442695
        %v1863 = vpow.pop %v1862
        %v1864 = vmul.f32 %v1772, 1.442695
        %v1865 = vpow.pop %v1864
        %v1866 = vmul.f32 %v1773, 1.442695
        %v1867 = vpow.pop %v1866
        %v1868 = vmul.f32 %v1774, 1.442695
        %v1869 = vpow.pop %v1868
        %v1870 = vmul.f32 %v1775, 1.442695
        %v1871 = vpow.pop %v1870
        %v1872 = vmul.f32 %v1776, 1.442695
        %v1873 = vpow.pop %v1872
        %v1874 = vmul.f32 %v1777, 1.442695
        %v1875 = vpow.pop %v1874
        %v1876 = vmul.f32 %v1778, 1.442695
        %v1877 = vpow.pop %v1876
        %v1878 = vmul.f32 %v1779, 1.442695
        %v1879 = vpow.pop %v1878
        %v1880 = vmul.f32 %v1780, 1.442695
        %v1881 = vpow.pop %v1880
        %v1882 = vmul.f32 %v1781, 1.442695
        %v1883 = vpow.pop %v1882
        %v1884 = vmul.f32 %v1782, 1.442695
        %v1885 = vpow.pop %v1884
        %v1886 = vmul.f32 %v1783, 1.442695
        %v1887 = vpow.pop %v1886
        %v1888 = vmul.f32 %v1784, 1.442695
        %v1889 = vpow.pop %v1888
        %v1890 = vmul.f32 %v1785, 1.442695
        %v1891 = vpow.pop %v1890
        %v1892 = vmul.f32 %v1786, 1.442695
        %v1893 = vpow.pop %v1892
        %v1894 = vmul.f32 %v1787, 1.442695
        %v1895 = vpow.pop %v1894
        %v1896 = vmul.f32 %v1788, 1.442695
        %v1897 = vpow.pop %v1896
        %v1898 = vmul.f32 %v1789, 1.442695
        %v1899 = vpow.pop %v1898
        %v1900 = vmul.f32 %v1790, 1.442695
        %v1901 = vpow.pop %v1900
        %v1902 = vmul.f32 %v1791, 1.442695
        %v1903 = vpow.pop %v1902
        %v1904 = vmul.f32 %v1792, 1.442695
        %v1905 = vpow.pop %v1904
        %v1906 = vmul.f32 %v1793, 1.442695
        %v1907 = vpow.pop %v1906
        %v1908 = vmul.f32 %v1794, 1.442695
        %v1909 = vpow.pop %v1908
        %v1910 = vmul.f32 %v1795, 1.442695
        %v1911 = vpow.pop %v1910
        %v1912 = vmul.f32 %v1796, 1.442695
        %v1913 = vpow.pop %v1912
        %v1914 = vmul.f32 %v1797, 1.442695
        %v1915 = vpow.pop %v1914
        %v1916 = vmul.f32 %v1798, 1.442695
        %v1917 = vpow.pop %v1916
        %v1918 = vmul.f32 %v1799, 1.442695
        %v1919 = vpow.pop %v1918
        %v1920 = vmul.f32 %v1800, 1.442695
        %v1921 = vpow.pop %v1920
        %v1922 = vmul.f32 %v1801, 1.442695
        %v1923 = vpow.pop %v1922
        %v1924 = vmul.f32 %v1802, 1.442695
        %v1925 = vpow.pop %v1924
        %v1926 = vmul.f32 %v1803, 1.442695
        %v1927 = vpow.pop %v1926
        %v1928 = vmul.f32 %v1804, 1.442695
        %v1929 = vpow.pop %v1928
        %v1930 = vmul.f32 %v1805, 1.442695
        %v1931 = vpow.pop %v1930
        %v1932 = vmul.f32 %v1806, 1.442695
        %v1933 = vpow.pop %v1932
        %v1934 = vmul.f32 %v1807, 1.442695
        %v1935 = vpow.pop %v1934
        %2000 = vset.pattern.permute.xlu0 0
        %2001 = vperm.xlu0 %2000, %v1809
        %v2002 = vpop.permute.xlu0 %2001
        %2003 = vset.pattern.permute.xlu0 0
        %2004 = vperm.xlu0 %2003, %v1811
        %v2005 = vpop.permute.xlu0 %2004
        %2006 = vset.pattern.permute.xlu0 0
        %2007 = vperm.xlu0 %2006, %v1813
        %v2008 = vpop.permute.xlu0 %2007
        %2009 = vset.pattern.permute.xlu0 0
        %2010 = vperm.xlu0 %2009, %v1815
        %v2011 = vpop.permute.xlu0 %2010
        %2012 = vset.pattern.permute.xlu0 0
        %2013 = vperm.xlu0 %2012, %v1817
        %v2014 = vpop.permute.xlu0 %2013
        %2015 = vset.pattern.permute.xlu0 0
        %2016 = vperm.xlu0 %2015, %v1819
        %v2017 = vpop.permute.xlu0 %2016
        %2018 = vset.pattern.permute.xlu0 0
        %2019 = vperm.xlu0 %2018, %v1821
        %v2020 = vpop.permute.xlu0 %2019
        %2021 = vset.pattern.permute.xlu0 0
        %2022 = vperm.xlu0 %2021, %v1823
        %v2023 = vpop.permute.xlu0 %2022
        %2024 = vset.pattern.permute.xlu0 0
        %2025 = vperm.xlu0 %2024, %v1825
        %v2026 = vpop.permute.xlu0 %2025
        %2027 = vset.pattern.permute.xlu0 0
        %2028 = vperm.xlu0 %2027, %v1827
        %v2029 = vpop.permute.xlu0 %2028
        %2030 = vset.pattern.permute.xlu0 0
        %2031 = vperm.xlu0 %2030, %v1829
        %v2032 = vpop.permute.xlu0 %2031
        %2033 = vset.pattern.permute.xlu0 0
        %2034 = vperm.xlu0 %2033, %v1831
        %v2035 = vpop.permute.xlu0 %2034
        %2036 = vset.pattern.permute.xlu0 0
        %2037 = vperm.xlu0 %2036, %v1833
        %v2038 = vpop.permute.xlu0 %2037
        %2039 = vset.pattern.permute.xlu0 0
        %2040 = vperm.xlu0 %2039, %v1835
        %v2041 = vpop.permute.xlu0 %2040
        %2042 = vset.pattern.permute.xlu0 0
        %2043 = vperm.xlu0 %2042, %v1837
        %v2044 = vpop.permute.xlu0 %2043
        %2045 = vset.pattern.permute.xlu0 0
        %2046 = vperm.xlu0 %2045, %v1839
        %v2047 = vpop.permute.xlu0 %2046
        %2048 = vset.pattern.permute.xlu0 0
        %2049 = vperm.xlu0 %2048, %v1841
        %v2050 = vpop.permute.xlu0 %2049
        %2051 = vset.pattern.permute.xlu0 0
        %2052 = vperm.xlu0 %2051, %v1843
        %v2053 = vpop.permute.xlu0 %2052
        %2054 = vset.pattern.permute.xlu0 0
        %2055 = vperm.xlu0 %2054, %v1845
        %v2056 = vpop.permute.xlu0 %2055
        %2057 = vset.pattern.permute.xlu0 0
        %2058 = vperm.xlu0 %2057, %v1847
        %v2059 = vpop.permute.xlu0 %2058
        %2060 = vset.pattern.permute.xlu0 0
        %2061 = vperm.xlu0 %2060, %v1849
        %v2062 = vpop.permute.xlu0 %2061
        %2063 = vset.pattern.permute.xlu0 0
        %2064 = vperm.xlu0 %2063, %v1851
        %v2065 = vpop.permute.xlu0 %2064
        %2066 = vset.pattern.permute.xlu0 0
        %2067 = vperm.xlu0 %2066, %v1853
        %v2068 = vpop.permute.xlu0 %2067
        %2069 = vset.pattern.permute.xlu0 0
        %2070 = vperm.xlu0 %2069, %v1855
        %v2071 = vpop.permute.xlu0 %2070
        %2072 = vset.pattern.permute.xlu0 0
        %2073 = vperm.xlu0 %2072, %v1857
        %v2074 = vpop.permute.xlu0 %2073
        %2075 = vset.pattern.permute.xlu0 0
        %2076 = vperm.xlu0 %2075, %v1859
        %v2077 = vpop.permute.xlu0 %2076
        %2078 = vset.pattern.permute.xlu0 0
        %2079 = vperm.xlu0 %2078, %v1861
        %v2080 = vpop.permute.xlu0 %2079
        %2081 = vset.pattern.permute.xlu0 0
        %2082 = vperm.xlu0 %2081, %v1863
        %v2083 = vpop.permute.xlu0 %2082
        %2084 = vset.pattern.permute.xlu0 0
        %2085 = vperm.xlu0 %2084, %v1865
        %v2086 = vpop.permute.xlu0 %2085
        %2087 = vset.pattern.permute.xlu0 0
        %2088 = vperm.xlu0 %2087, %v1867
        %v2089 = vpop.permute.xlu0 %2088
        %2090 = vset.pattern.permute.xlu0 0
        %2091 = vperm.xlu0 %2090, %v1869
        %v2092 = vpop.permute.xlu0 %2091
        %2093 = vset.pattern.permute.xlu0 0
        %2094 = vperm.xlu0 %2093, %v1871
        %v2095 = vpop.permute.xlu0 %2094
        %2096 = vset.pattern.permute.xlu0 0
        %2097 = vperm.xlu0 %2096, %v1873
        %v2098 = vpop.permute.xlu0 %2097
        %2099 = vset.pattern.permute.xlu0 0
        %2100 = vperm.xlu0 %2099, %v1875
        %v2101 = vpop.permute.xlu0 %2100
        %2102 = vset.pattern.permute.xlu0 0
        %2103 = vperm.xlu0 %2102, %v1877
        %v2104 = vpop.permute.xlu0 %2103
        %2105 = vset.pattern.permute.xlu0 0
        %2106 = vperm.xlu0 %2105, %v1879
        %v2107 = vpop.permute.xlu0 %2106
        %2108 = vset.pattern.permute.xlu0 0
        %2109 = vperm.xlu0 %2108, %v1881
        %v2110 = vpop.permute.xlu0 %2109
        %2111 = vset.pattern.permute.xlu0 0
        %2112 = vperm.xlu0 %2111, %v1883
        %v2113 = vpop.permute.xlu0 %2112
        %2114 = vset.pattern.permute.xlu0 0
        %2115 = vperm.xlu0 %2114, %v1885
        %v2116 = vpop.permute.xlu0 %2115
        %2117 = vset.pattern.permute.xlu0 0
        %2118 = vperm.xlu0 %2117, %v1887
        %v2119 = vpop.permute.xlu0 %2118
        %2120 = vset.pattern.permute.xlu0 0
        %2121 = vperm.xlu0 %2120, %v1889
        %v2122 = vpop.permute.xlu0 %2121
        %2123 = vset.pattern.permute.xlu0 0
        %2124 = vperm.xlu0 %2123, %v1891
        %v2125 = vpop.permute.xlu0 %2124
        %2126 = vset.pattern.permute.xlu0 0
        %2127 = vperm.xlu0 %2126, %v1893
        %v2128 = vpop.permute.xlu0 %2127
        %2129 = vset.pattern.permute.xlu0 0
        %2130 = vperm.xlu0 %2129, %v1895
        %v2131 = vpop.permute.xlu0 %2130
        %2132 = vset.pattern.permute.xlu0 0
        %2133 = vperm.xlu0 %2132, %v1897
        %v2134 = vpop.permute.xlu0 %2133
        %2135 = vset.pattern.permute.xlu0 0
        %2136 = vperm.xlu0 %2135, %v1899
        %v2137 = vpop.permute.xlu0 %2136
        %2138 = vset.pattern.permute.xlu0 0
        %2139 = vperm.xlu0 %2138, %v1901
        %v2140 = vpop.permute.xlu0 %2139
        %2141 = vset.pattern.permute.xlu0 0
        %2142 = vperm.xlu0 %2141, %v1903
        %v2143 = vpop.permute.xlu0 %2142
        %2144 = vset.pattern.permute.xlu0 0
        %2145 = vperm.xlu0 %2144, %v1905
        %v2146 = vpop.permute.xlu0 %2145
        %2147 = vset.pattern.permute.xlu0 0
        %2148 = vperm.xlu0 %2147, %v1907
        %v2149 = vpop.permute.xlu0 %2148
        %2150 = vset.pattern.permute.xlu0 0
        %2151 = vperm.xlu0 %2150, %v1909
        %v2152 = vpop.permute.xlu0 %2151
        %2153 = vset.pattern.permute.xlu0 0
        %2154 = vperm.xlu0 %2153, %v1911
        %v2155 = vpop.permute.xlu0 %2154
        %2156 = vset.pattern.permute.xlu0 0
        %2157 = vperm.xlu0 %2156, %v1913
        %v2158 = vpop.permute.xlu0 %2157
        %2159 = vset.pattern.permute.xlu0 0
        %2160 = vperm.xlu0 %2159, %v1915
        %v2161 = vpop.permute.xlu0 %2160
        %2162 = vset.pattern.permute.xlu0 0
        %2163 = vperm.xlu0 %2162, %v1917
        %v2164 = vpop.permute.xlu0 %2163
        %2165 = vset.pattern.permute.xlu0 0
        %2166 = vperm.xlu0 %2165, %v1919
        %v2167 = vpop.permute.xlu0 %2166
        %2168 = vset.pattern.permute.xlu0 0
        %2169 = vperm.xlu0 %2168, %v1921
        %v2170 = vpop.permute.xlu0 %2169
        %2171 = vset.pattern.permute.xlu0 0
        %2172 = vperm.xlu0 %2171, %v1923
        %v2173 = vpop.permute.xlu0 %2172
        %2174 = vset.pattern.permute.xlu0 0
        %2175 = vperm.xlu0 %2174, %v1925
        %v2176 = vpop.permute.xlu0 %2175
        %2177 = vset.pattern.permute.xlu0 0
        %2178 = vperm.xlu0 %2177, %v1927
        %v2179 = vpop.permute.xlu0 %2178
        %2180 = vset.pattern.permute.xlu0 0
        %2181 = vperm.xlu0 %2180, %v1929
        %v2182 = vpop.permute.xlu0 %2181
        %2183 = vset.pattern.permute.xlu0 0
        %2184 = vperm.xlu0 %2183, %v1931
        %v2185 = vpop.permute.xlu0 %2184
        %2186 = vset.pattern.permute.xlu0 0
        %2187 = vperm.xlu0 %2186, %v1933
        %v2188 = vpop.permute.xlu0 %2187
        %2189 = vset.pattern.permute.xlu0 0
        %2190 = vperm.xlu0 %2189, %v1935
        %v2191 = vpop.permute.xlu0 %2190
        %v2192 = vlaneseq
        %v2193 = vshrl.u32 %v2192, 7
        %v2194 = vsub.s32 %v1368, %v2193
        %v2195 = vrot.slane %v2002, %v2194
        %v2196 = vlaneseq
        %v2197 = vshrl.u32 %v2196, 7
        %v2198 = vsub.s32 %v1373, %v2197
        %v2199 = vrot.slane %v2005, %v2198
        %v2200 = vsel %vm1378, %v2199, %v2195
        %v2201 = vlaneseq
        %v2202 = vshrl.u32 %v2201, 7
        %v2203 = vsub.s32 %v1380, %v2202
        %v2204 = vrot.slane %v2008, %v2203
        %v2205 = vsel %vm1385, %v2204, %v2200
        %v2206 = vlaneseq
        %v2207 = vshrl.u32 %v2206, 7
        %v2208 = vsub.s32 %v1387, %v2207
        %v2209 = vrot.slane %v2011, %v2208
        %v2210 = vsel %vm1392, %v2209, %v2205
        %v2211 = vlaneseq
        %v2212 = vshrl.u32 %v2211, 7
        %v2213 = vsub.s32 %v1394, %v2212
        %v2214 = vrot.slane %v2014, %v2213
        %v2215 = vsel %vm1399, %v2214, %v2210
        %v2216 = vlaneseq
        %v2217 = vshrl.u32 %v2216, 7
        %v2218 = vsub.s32 %v1401, %v2217
        %v2219 = vrot.slane %v2017, %v2218
        %v2220 = vsel %vm1406, %v2219, %v2215
        %v2221 = vlaneseq
        %v2222 = vshrl.u32 %v2221, 7
        %v2223 = vsub.s32 %v1408, %v2222
        %v2224 = vrot.slane %v2020, %v2223
        %v2225 = vsel %vm1413, %v2224, %v2220
        %v2226 = vlaneseq
        %v2227 = vshrl.u32 %v2226, 7
        %v2228 = vsub.s32 %v1415, %v2227
        %v2229 = vrot.slane %v2023, %v2228
        %v2230 = vsel %vm1420, %v2229, %v2225
        %v2231 = vlaneseq
        %v2232 = vshrl.u32 %v2231, 7
        %v2233 = vsub.s32 %v1422, %v2232
        %v2234 = vrot.slane %v2026, %v2233
        %v2235 = vsel %vm1427, %v2234, %v2230
        %v2236 = vlaneseq
        %v2237 = vshrl.u32 %v2236, 7
        %v2238 = vsub.s32 %v1429, %v2237
        %v2239 = vrot.slane %v2029, %v2238
        %v2240 = vsel %vm1434, %v2239, %v2235
        %v2241 = vlaneseq
        %v2242 = vshrl.u32 %v2241, 7
        %v2243 = vsub.s32 %v1436, %v2242
        %v2244 = vrot.slane %v2032, %v2243
        %v2245 = vsel %vm1441, %v2244, %v2240
        %v2246 = vlaneseq
        %v2247 = vshrl.u32 %v2246, 7
        %v2248 = vsub.s32 %v1443, %v2247
        %v2249 = vrot.slane %v2035, %v2248
        %v2250 = vsel %vm1448, %v2249, %v2245
        %v2251 = vlaneseq
        %v2252 = vshrl.u32 %v2251, 7
        %v2253 = vsub.s32 %v1450, %v2252
        %v2254 = vrot.slane %v2038, %v2253
        %v2255 = vsel %vm1455, %v2254, %v2250
        %v2256 = vlaneseq
        %v2257 = vshrl.u32 %v2256, 7
        %v2258 = vsub.s32 %v1457, %v2257
        %v2259 = vrot.slane %v2041, %v2258
        %v2260 = vsel %vm1462, %v2259, %v2255
        %v2261 = vlaneseq
        %v2262 = vshrl.u32 %v2261, 7
        %v2263 = vsub.s32 %v1464, %v2262
        %v2264 = vrot.slane %v2044, %v2263
        %v2265 = vsel %vm1469, %v2264, %v2260
        %v2266 = vlaneseq
        %v2267 = vshrl.u32 %v2266, 7
        %v2268 = vsub.s32 %v1471, %v2267
        %v2269 = vrot.slane %v2047, %v2268
        %v2270 = vsel %vm1476, %v2269, %v2265
        %v2271 = vlaneseq
        %v2272 = vshrl.u32 %v2271, 7
        %v2273 = vsub.s32 %v1368, %v2272
        %v2274 = vrot.slane %v2050, %v2273
        %v2275 = vlaneseq
        %v2276 = vshrl.u32 %v2275, 7
        %v2277 = vsub.s32 %v1373, %v2276
        %v2278 = vrot.slane %v2053, %v2277
        %v2279 = vsel %vm1378, %v2278, %v2274
        %v2280 = vlaneseq
        %v2281 = vshrl.u32 %v2280, 7
        %v2282 = vsub.s32 %v1380, %v2281
        %v2283 = vrot.slane %v2056, %v2282
        %v2284 = vsel %vm1385, %v2283, %v2279
        %v2285 = vlaneseq
        %v2286 = vshrl.u32 %v2285, 7
        %v2287 = vsub.s32 %v1387, %v2286
        %v2288 = vrot.slane %v2059, %v2287
        %v2289 = vsel %vm1392, %v2288, %v2284
        %v2290 = vlaneseq
        %v2291 = vshrl.u32 %v2290, 7
        %v2292 = vsub.s32 %v1394, %v2291
        %v2293 = vrot.slane %v2062, %v2292
        %v2294 = vsel %vm1399, %v2293, %v2289
        %v2295 = vlaneseq
        %v2296 = vshrl.u32 %v2295, 7
        %v2297 = vsub.s32 %v1401, %v2296
        %v2298 = vrot.slane %v2065, %v2297
        %v2299 = vsel %vm1406, %v2298, %v2294
        %v2300 = vlaneseq
        %v2301 = vshrl.u32 %v2300, 7
        %v2302 = vsub.s32 %v1408, %v2301
        %v2303 = vrot.slane %v2068, %v2302
        %v2304 = vsel %vm1413, %v2303, %v2299
        %v2305 = vlaneseq
        %v2306 = vshrl.u32 %v2305, 7
        %v2307 = vsub.s32 %v1415, %v2306
        %v2308 = vrot.slane %v2071, %v2307
        %v2309 = vsel %vm1420, %v2308, %v2304
        %v2310 = vlaneseq
        %v2311 = vshrl.u32 %v2310, 7
        %v2312 = vsub.s32 %v1422, %v2311
        %v2313 = vrot.slane %v2074, %v2312
        %v2314 = vsel %vm1427, %v2313, %v2309
        %v2315 = vlaneseq
        %v2316 = vshrl.u32 %v2315, 7
        %v2317 = vsub.s32 %v1429, %v2316
        %v2318 = vrot.slane %v2077, %v2317
        %v2319 = vsel %vm1434, %v2318, %v2314
        %v2320 = vlaneseq
        %v2321 = vshrl.u32 %v2320, 7
        %v2322 = vsub.s32 %v1436, %v2321
        %v2323 = vrot.slane %v2080, %v2322
        %v2324 = vsel %vm1441, %v2323, %v2319
        %v2325 = vlaneseq
        %v2326 = vshrl.u32 %v2325, 7
        %v2327 = vsub.s32 %v1443, %v2326
        %v2328 = vrot.slane %v2083, %v2327
        %v2329 = vsel %vm1448, %v2328, %v2324
        %v2330 = vlaneseq
        %v2331 = vshrl.u32 %v2330, 7
        %v2332 = vsub.s32 %v1450, %v2331
        %v2333 = vrot.slane %v2086, %v2332
        %v2334 = vsel %vm1455, %v2333, %v2329
        %v2335 = vlaneseq
        %v2336 = vshrl.u32 %v2335, 7
        %v2337 = vsub.s32 %v1457, %v2336
        %v2338 = vrot.slane %v2089, %v2337
        %v2339 = vsel %vm1462, %v2338, %v2334
        %v2340 = vlaneseq
        %v2341 = vshrl.u32 %v2340, 7
        %v2342 = vsub.s32 %v1464, %v2341
        %v2343 = vrot.slane %v2092, %v2342
        %v2344 = vsel %vm1469, %v2343, %v2339
        %v2345 = vlaneseq
        %v2346 = vshrl.u32 %v2345, 7
        %v2347 = vsub.s32 %v1471, %v2346
        %v2348 = vrot.slane %v2095, %v2347
        %v2349 = vsel %vm1476, %v2348, %v2344
        %v2350 = vlaneseq
        %v2351 = vshrl.u32 %v2350, 7
        %v2352 = vsub.s32 %v1368, %v2351
        %v2353 = vrot.slane %v2098, %v2352
        %v2354 = vlaneseq
        %v2355 = vshrl.u32 %v2354, 7
        %v2356 = vsub.s32 %v1373, %v2355
        %v2357 = vrot.slane %v2101, %v2356
        %v2358 = vsel %vm1378, %v2357, %v2353
        %v2359 = vlaneseq
        %v2360 = vshrl.u32 %v2359, 7
        %v2361 = vsub.s32 %v1380, %v2360
        %v2362 = vrot.slane %v2104, %v2361
        %v2363 = vsel %vm1385, %v2362, %v2358
        %v2364 = vlaneseq
        %v2365 = vshrl.u32 %v2364, 7
        %v2366 = vsub.s32 %v1387, %v2365
        %v2367 = vrot.slane %v2107, %v2366
        %v2368 = vsel %vm1392, %v2367, %v2363
        %v2369 = vlaneseq
        %v2370 = vshrl.u32 %v2369, 7
        %v2371 = vsub.s32 %v1394, %v2370
        %v2372 = vrot.slane %v2110, %v2371
        %v2373 = vsel %vm1399, %v2372, %v2368
        %v2374 = vlaneseq
        %v2375 = vshrl.u32 %v2374, 7
        %v2376 = vsub.s32 %v1401, %v2375
        %v2377 = vrot.slane %v2113, %v2376
        %v2378 = vsel %vm1406, %v2377, %v2373
        %v2379 = vlaneseq
        %v2380 = vshrl.u32 %v2379, 7
        %v2381 = vsub.s32 %v1408, %v2380
        %v2382 = vrot.slane %v2116, %v2381
        %v2383 = vsel %vm1413, %v2382, %v2378
        %v2384 = vlaneseq
        %v2385 = vshrl.u32 %v2384, 7
        %v2386 = vsub.s32 %v1415, %v2385
        %v2387 = vrot.slane %v2119, %v2386
        %v2388 = vsel %vm1420, %v2387, %v2383
        %v2389 = vlaneseq
        %v2390 = vshrl.u32 %v2389, 7
        %v2391 = vsub.s32 %v1422, %v2390
        %v2392 = vrot.slane %v2122, %v2391
        %v2393 = vsel %vm1427, %v2392, %v2388
        %v2394 = vlaneseq
        %v2395 = vshrl.u32 %v2394, 7
        %v2396 = vsub.s32 %v1429, %v2395
        %v2397 = vrot.slane %v2125, %v2396
        %v2398 = vsel %vm1434, %v2397, %v2393
        %v2399 = vlaneseq
        %v2400 = vshrl.u32 %v2399, 7
        %v2401 = vsub.s32 %v1436, %v2400
        %v2402 = vrot.slane %v2128, %v2401
        %v2403 = vsel %vm1441, %v2402, %v2398
        %v2404 = vlaneseq
        %v2405 = vshrl.u32 %v2404, 7
        %v2406 = vsub.s32 %v1443, %v2405
        %v2407 = vrot.slane %v2131, %v2406
        %v2408 = vsel %vm1448, %v2407, %v2403
        %v2409 = vlaneseq
        %v2410 = vshrl.u32 %v2409, 7
        %v2411 = vsub.s32 %v1450, %v2410
        %v2412 = vrot.slane %v2134, %v2411
        %v2413 = vsel %vm1455, %v2412, %v2408
        %v2414 = vlaneseq
        %v2415 = vshrl.u32 %v2414, 7
        %v2416 = vsub.s32 %v1457, %v2415
        %v2417 = vrot.slane %v2137, %v2416
        %v2418 = vsel %vm1462, %v2417, %v2413
        %v2419 = vlaneseq
        %v2420 = vshrl.u32 %v2419, 7
        %v2421 = vsub.s32 %v1464, %v2420
        %v2422 = vrot.slane %v2140, %v2421
        %v2423 = vsel %vm1469, %v2422, %v2418
        %v2424 = vlaneseq
        %v2425 = vshrl.u32 %v2424, 7
        %v2426 = vsub.s32 %v1471, %v2425
        %v2427 = vrot.slane %v2143, %v2426
        %v2428 = vsel %vm1476, %v2427, %v2423
        %v2429 = vlaneseq
        %v2430 = vshrl.u32 %v2429, 7
        %v2431 = vsub.s32 %v1368, %v2430
        %v2432 = vrot.slane %v2146, %v2431
        %v2433 = vlaneseq
        %v2434 = vshrl.u32 %v2433, 7
        %v2435 = vsub.s32 %v1373, %v2434
        %v2436 = vrot.slane %v2149, %v2435
        %v2437 = vsel %vm1378, %v2436, %v2432
        %v2438 = vlaneseq
        %v2439 = vshrl.u32 %v2438, 7
        %v2440 = vsub.s32 %v1380, %v2439
        %v2441 = vrot.slane %v2152, %v2440
        %v2442 = vsel %vm1385, %v2441, %v2437
        %v2443 = vlaneseq
        %v2444 = vshrl.u32 %v2443, 7
        %v2445 = vsub.s32 %v1387, %v2444
        %v2446 = vrot.slane %v2155, %v2445
        %v2447 = vsel %vm1392, %v2446, %v2442
        %v2448 = vlaneseq
        %v2449 = vshrl.u32 %v2448, 7
        %v2450 = vsub.s32 %v1394, %v2449
        %v2451 = vrot.slane %v2158, %v2450
        %v2452 = vsel %vm1399, %v2451, %v2447
        %v2453 = vlaneseq
        %v2454 = vshrl.u32 %v2453, 7
        %v2455 = vsub.s32 %v1401, %v2454
        %v2456 = vrot.slane %v2161, %v2455
        %v2457 = vsel %vm1406, %v2456, %v2452
        %v2458 = vlaneseq
        %v2459 = vshrl.u32 %v2458, 7
        %v2460 = vsub.s32 %v1408, %v2459
        %v2461 = vrot.slane %v2164, %v2460
        %v2462 = vsel %vm1413, %v2461, %v2457
        %v2463 = vlaneseq
        %v2464 = vshrl.u32 %v2463, 7
        %v2465 = vsub.s32 %v1415, %v2464
        %v2466 = vrot.slane %v2167, %v2465
        %v2467 = vsel %vm1420, %v2466, %v2462
        %v2468 = vlaneseq
        %v2469 = vshrl.u32 %v2468, 7
        %v2470 = vsub.s32 %v1422, %v2469
        %v2471 = vrot.slane %v2170, %v2470
        %v2472 = vsel %vm1427, %v2471, %v2467
        %v2473 = vlaneseq
        %v2474 = vshrl.u32 %v2473, 7
        %v2475 = vsub.s32 %v1429, %v2474
        %v2476 = vrot.slane %v2173, %v2475
        %v2477 = vsel %vm1434, %v2476, %v2472
        %v2478 = vlaneseq
        %v2479 = vshrl.u32 %v2478, 7
        %v2480 = vsub.s32 %v1436, %v2479
        %v2481 = vrot.slane %v2176, %v2480
        %v2482 = vsel %vm1441, %v2481, %v2477
        %v2483 = vlaneseq
        %v2484 = vshrl.u32 %v2483, 7
        %v2485 = vsub.s32 %v1443, %v2484
        %v2486 = vrot.slane %v2179, %v2485
        %v2487 = vsel %vm1448, %v2486, %v2482
        %v2488 = vlaneseq
        %v2489 = vshrl.u32 %v2488, 7
        %v2490 = vsub.s32 %v1450, %v2489
        %v2491 = vrot.slane %v2182, %v2490
        %v2492 = vsel %vm1455, %v2491, %v2487
        %v2493 = vlaneseq
        %v2494 = vshrl.u32 %v2493, 7
        %v2495 = vsub.s32 %v1457, %v2494
        %v2496 = vrot.slane %v2185, %v2495
        %v2497 = vsel %vm1462, %v2496, %v2492
        %v2498 = vlaneseq
        %v2499 = vshrl.u32 %v2498, 7
        %v2500 = vsub.s32 %v1464, %v2499
        %v2501 = vrot.slane %v2188, %v2500
        %v2502 = vsel %vm1469, %v2501, %v2497
        %v2503 = vlaneseq
        %v2504 = vshrl.u32 %v2503, 7
        %v2505 = vsub.s32 %v1471, %v2504
        %v2506 = vrot.slane %v2191, %v2505
        %v2507 = vsel %vm1476, %v2506, %v2502
        %v2508 = vsel %vm384, %v2349, %v2270
        %v2509 = vsel %vm387, %v2428, %v2508
        %v2510 = vsel %vm390, %v2507, %v2509
        %v2512 = vsel %vm1719, %v2510, 0.0
        %2513 = vadd.xlane.f32.xlu0 %v2512
        %v2514 = vpop.xlane.xlu0 %2513
        %v2516 = vlaneseq
        %v2517 = vshrl.u32 %v2516, 7
        %v2518 = vsub.s32 0, %v2517
        %v2519 = vrot.slane %v2514, %v2518
        %v2520 = vlaneseq
        %v2521 = vshrl.u32 %v2520, 7
        %v2522 = vsub.s32 1, %v2521
        %v2523 = vrot.slane %v2514, %v2522
        %v2524 = vlaneseq
        %v2525 = vshrl.u32 %v2524, 7
        %v2526 = vsub.s32 2, %v2525
        %v2527 = vrot.slane %v2514, %v2526
        %v2528 = vlaneseq
        %v2529 = vshrl.u32 %v2528, 7
        %v2530 = vsub.s32 3, %v2529
        %v2531 = vrot.slane %v2514, %v2530
        %v2536 = vrcp.pop %v2519
        %v2537 = vmul.f32 %v1809, %v2536
        %v2538 = vmul.f32 %v1811, %v2536
        %v2539 = vmul.f32 %v1813, %v2536
        %v2540 = vmul.f32 %v1815, %v2536
        %v2541 = vmul.f32 %v1817, %v2536
        %v2542 = vmul.f32 %v1819, %v2536
        %v2543 = vmul.f32 %v1821, %v2536
        %v2544 = vmul.f32 %v1823, %v2536
        %v2545 = vmul.f32 %v1825, %v2536
        %v2546 = vmul.f32 %v1827, %v2536
        %v2547 = vmul.f32 %v1829, %v2536
        %v2548 = vmul.f32 %v1831, %v2536
        %v2549 = vmul.f32 %v1833, %v2536
        %v2550 = vmul.f32 %v1835, %v2536
        %v2551 = vmul.f32 %v1837, %v2536
        %v2552 = vmul.f32 %v1839, %v2536
        %v2553 = vrcp.pop %v2523
        %v2554 = vmul.f32 %v1841, %v2553
        %v2555 = vmul.f32 %v1843, %v2553
        %v2556 = vmul.f32 %v1845, %v2553
        %v2557 = vmul.f32 %v1847, %v2553
        %v2558 = vmul.f32 %v1849, %v2553
        %v2559 = vmul.f32 %v1851, %v2553
        %v2560 = vmul.f32 %v1853, %v2553
        %v2561 = vmul.f32 %v1855, %v2553
        %v2562 = vmul.f32 %v1857, %v2553
        %v2563 = vmul.f32 %v1859, %v2553
        %v2564 = vmul.f32 %v1861, %v2553
        %v2565 = vmul.f32 %v1863, %v2553
        %v2566 = vmul.f32 %v1865, %v2553
        %v2567 = vmul.f32 %v1867, %v2553
        %v2568 = vmul.f32 %v1869, %v2553
        %v2569 = vmul.f32 %v1871, %v2553
        %v2570 = vrcp.pop %v2527
        %v2571 = vmul.f32 %v1873, %v2570
        %v2572 = vmul.f32 %v1875, %v2570
        %v2573 = vmul.f32 %v1877, %v2570
        %v2574 = vmul.f32 %v1879, %v2570
        %v2575 = vmul.f32 %v1881, %v2570
        %v2576 = vmul.f32 %v1883, %v2570
        %v2577 = vmul.f32 %v1885, %v2570
        %v2578 = vmul.f32 %v1887, %v2570
        %v2579 = vmul.f32 %v1889, %v2570
        %v2580 = vmul.f32 %v1891, %v2570
        %v2581 = vmul.f32 %v1893, %v2570
        %v2582 = vmul.f32 %v1895, %v2570
        %v2583 = vmul.f32 %v1897, %v2570
        %v2584 = vmul.f32 %v1899, %v2570
        %v2585 = vmul.f32 %v1901, %v2570
        %v2586 = vmul.f32 %v1903, %v2570
        %v2587 = vrcp.pop %v2531
        %v2588 = vmul.f32 %v1905, %v2587
        %v2589 = vmul.f32 %v1907, %v2587
        %v2590 = vmul.f32 %v1909, %v2587
        %v2591 = vmul.f32 %v1911, %v2587
        %v2592 = vmul.f32 %v1913, %v2587
        %v2593 = vmul.f32 %v1915, %v2587
        %v2594 = vmul.f32 %v1917, %v2587
        %v2595 = vmul.f32 %v1919, %v2587
        %v2596 = vmul.f32 %v1921, %v2587
        %v2597 = vmul.f32 %v1923, %v2587
        %v2598 = vmul.f32 %v1925, %v2587
        %v2599 = vmul.f32 %v1927, %v2587
        %v2600 = vmul.f32 %v1929, %v2587
        %v2601 = vmul.f32 %v1931, %v2587
        %v2602 = vmul.f32 %v1933, %v2587
        %v2603 = vmul.f32 %v1935, %v2587
        %2668 = vset.pattern.permute.xlu0 0
        %2669 = vperm.xlu0 %2668, %v2537
        %v2670 = vpop.permute.xlu0 %2669
        %2671 = vset.pattern.permute.xlu0 0
        %2672 = vperm.xlu0 %2671, %v2538
        %v2673 = vpop.permute.xlu0 %2672
        %2674 = vset.pattern.permute.xlu0 0
        %2675 = vperm.xlu0 %2674, %v2539
        %v2676 = vpop.permute.xlu0 %2675
        %2677 = vset.pattern.permute.xlu0 0
        %2678 = vperm.xlu0 %2677, %v2540
        %v2679 = vpop.permute.xlu0 %2678
        %2680 = vset.pattern.permute.xlu0 0
        %2681 = vperm.xlu0 %2680, %v2541
        %v2682 = vpop.permute.xlu0 %2681
        %2683 = vset.pattern.permute.xlu0 0
        %2684 = vperm.xlu0 %2683, %v2542
        %v2685 = vpop.permute.xlu0 %2684
        %2686 = vset.pattern.permute.xlu0 0
        %2687 = vperm.xlu0 %2686, %v2543
        %v2688 = vpop.permute.xlu0 %2687
        %2689 = vset.pattern.permute.xlu0 0
        %2690 = vperm.xlu0 %2689, %v2544
        %v2691 = vpop.permute.xlu0 %2690
        %2692 = vset.pattern.permute.xlu0 0
        %2693 = vperm.xlu0 %2692, %v2545
        %v2694 = vpop.permute.xlu0 %2693
        %2695 = vset.pattern.permute.xlu0 0
        %2696 = vperm.xlu0 %2695, %v2546
        %v2697 = vpop.permute.xlu0 %2696
        %2698 = vset.pattern.permute.xlu0 0
        %2699 = vperm.xlu0 %2698, %v2547
        %v2700 = vpop.permute.xlu0 %2699
        %2701 = vset.pattern.permute.xlu0 0
        %2702 = vperm.xlu0 %2701, %v2548
        %v2703 = vpop.permute.xlu0 %2702
        %2704 = vset.pattern.permute.xlu0 0
        %2705 = vperm.xlu0 %2704, %v2549
        %v2706 = vpop.permute.xlu0 %2705
        %2707 = vset.pattern.permute.xlu0 0
        %2708 = vperm.xlu0 %2707, %v2550
        %v2709 = vpop.permute.xlu0 %2708
        %2710 = vset.pattern.permute.xlu0 0
        %2711 = vperm.xlu0 %2710, %v2551
        %v2712 = vpop.permute.xlu0 %2711
        %2713 = vset.pattern.permute.xlu0 0
        %2714 = vperm.xlu0 %2713, %v2552
        %v2715 = vpop.permute.xlu0 %2714
        %2716 = vset.pattern.permute.xlu0 0
        %2717 = vperm.xlu0 %2716, %v2554
        %v2718 = vpop.permute.xlu0 %2717
        %2719 = vset.pattern.permute.xlu0 0
        %2720 = vperm.xlu0 %2719, %v2555
        %v2721 = vpop.permute.xlu0 %2720
        %2722 = vset.pattern.permute.xlu0 0
        %2723 = vperm.xlu0 %2722, %v2556
        %v2724 = vpop.permute.xlu0 %2723
        %2725 = vset.pattern.permute.xlu0 0
        %2726 = vperm.xlu0 %2725, %v2557
        %v2727 = vpop.permute.xlu0 %2726
        %2728 = vset.pattern.permute.xlu0 0
        %2729 = vperm.xlu0 %2728, %v2558
        %v2730 = vpop.permute.xlu0 %2729
        %2731 = vset.pattern.permute.xlu0 0
        %2732 = vperm.xlu0 %2731, %v2559
        %v2733 = vpop.permute.xlu0 %2732
        %2734 = vset.pattern.permute.xlu0 0
        %2735 = vperm.xlu0 %2734, %v2560
        %v2736 = vpop.permute.xlu0 %2735
        %2737 = vset.pattern.permute.xlu0 0
        %2738 = vperm.xlu0 %2737, %v2561
        %v2739 = vpop.permute.xlu0 %2738
        %2740 = vset.pattern.permute.xlu0 0
        %2741 = vperm.xlu0 %2740, %v2562
        %v2742 = vpop.permute.xlu0 %2741
        %2743 = vset.pattern.permute.xlu0 0
        %2744 = vperm.xlu0 %2743, %v2563
        %v2745 = vpop.permute.xlu0 %2744
        %2746 = vset.pattern.permute.xlu0 0
        %2747 = vperm.xlu0 %2746, %v2564
        %v2748 = vpop.permute.xlu0 %2747
        %2749 = vset.pattern.permute.xlu0 0
        %2750 = vperm.xlu0 %2749, %v2565
        %v2751 = vpop.permute.xlu0 %2750
        %2752 = vset.pattern.permute.xlu0 0
        %2753 = vperm.xlu0 %2752, %v2566
        %v2754 = vpop.permute.xlu0 %2753
        %2755 = vset.pattern.permute.xlu0 0
        %2756 = vperm.xlu0 %2755, %v2567
        %v2757 = vpop.permute.xlu0 %2756
        %2758 = vset.pattern.permute.xlu0 0
        %2759 = vperm.xlu0 %2758, %v2568
        %v2760 = vpop.permute.xlu0 %2759
        %2761 = vset.pattern.permute.xlu0 0
        %2762 = vperm.xlu0 %2761, %v2569
        %v2763 = vpop.permute.xlu0 %2762
        %2764 = vset.pattern.permute.xlu0 0
        %2765 = vperm.xlu0 %2764, %v2571
        %v2766 = vpop.permute.xlu0 %2765
        %2767 = vset.pattern.permute.xlu0 0
        %2768 = vperm.xlu0 %2767, %v2572
        %v2769 = vpop.permute.xlu0 %2768
        %2770 = vset.pattern.permute.xlu0 0
        %2771 = vperm.xlu0 %2770, %v2573
        %v2772 = vpop.permute.xlu0 %2771
        %2773 = vset.pattern.permute.xlu0 0
        %2774 = vperm.xlu0 %2773, %v2574
        %v2775 = vpop.permute.xlu0 %2774
        %2776 = vset.pattern.permute.xlu0 0
        %2777 = vperm.xlu0 %2776, %v2575
        %v2778 = vpop.permute.xlu0 %2777
        %2779 = vset.pattern.permute.xlu0 0
        %2780 = vperm.xlu0 %2779, %v2576
        %v2781 = vpop.permute.xlu0 %2780
        %2782 = vset.pattern.permute.xlu0 0
        %2783 = vperm.xlu0 %2782, %v2577
        %v2784 = vpop.permute.xlu0 %2783
        %2785 = vset.pattern.permute.xlu0 0
        %2786 = vperm.xlu0 %2785, %v2578
        %v2787 = vpop.permute.xlu0 %2786
        %2788 = vset.pattern.permute.xlu0 0
        %2789 = vperm.xlu0 %2788, %v2579
        %v2790 = vpop.permute.xlu0 %2789
        %2791 = vset.pattern.permute.xlu0 0
        %2792 = vperm.xlu0 %2791, %v2580
        %v2793 = vpop.permute.xlu0 %2792
        %2794 = vset.pattern.permute.xlu0 0
        %2795 = vperm.xlu0 %2794, %v2581
        %v2796 = vpop.permute.xlu0 %2795
        %2797 = vset.pattern.permute.xlu0 0
        %2798 = vperm.xlu0 %2797, %v2582
        %v2799 = vpop.permute.xlu0 %2798
        %2800 = vset.pattern.permute.xlu0 0
        %2801 = vperm.xlu0 %2800, %v2583
        %v2802 = vpop.permute.xlu0 %2801
        %2803 = vset.pattern.permute.xlu0 0
        %2804 = vperm.xlu0 %2803, %v2584
        %v2805 = vpop.permute.xlu0 %2804
        %2806 = vset.pattern.permute.xlu0 0
        %2807 = vperm.xlu0 %2806, %v2585
        %v2808 = vpop.permute.xlu0 %2807
        %2809 = vset.pattern.permute.xlu0 0
        %2810 = vperm.xlu0 %2809, %v2586
        %v2811 = vpop.permute.xlu0 %2810
        %2812 = vset.pattern.permute.xlu0 0
        %2813 = vperm.xlu0 %2812, %v2588
        %v2814 = vpop.permute.xlu0 %2813
        %2815 = vset.pattern.permute.xlu0 0
        %2816 = vperm.xlu0 %2815, %v2589
        %v2817 = vpop.permute.xlu0 %2816
        %2818 = vset.pattern.permute.xlu0 0
        %2819 = vperm.xlu0 %2818, %v2590
        %v2820 = vpop.permute.xlu0 %2819
        %2821 = vset.pattern.permute.xlu0 0
        %2822 = vperm.xlu0 %2821, %v2591
        %v2823 = vpop.permute.xlu0 %2822
        %2824 = vset.pattern.permute.xlu0 0
        %2825 = vperm.xlu0 %2824, %v2592
        %v2826 = vpop.permute.xlu0 %2825
        %2827 = vset.pattern.permute.xlu0 0
        %2828 = vperm.xlu0 %2827, %v2593
        %v2829 = vpop.permute.xlu0 %2828
        %2830 = vset.pattern.permute.xlu0 0
        %2831 = vperm.xlu0 %2830, %v2594
        %v2832 = vpop.permute.xlu0 %2831
        %2833 = vset.pattern.permute.xlu0 0
        %2834 = vperm.xlu0 %2833, %v2595
        %v2835 = vpop.permute.xlu0 %2834
        %2836 = vset.pattern.permute.xlu0 0
        %2837 = vperm.xlu0 %2836, %v2596
        %v2838 = vpop.permute.xlu0 %2837
        %2839 = vset.pattern.permute.xlu0 0
        %2840 = vperm.xlu0 %2839, %v2597
        %v2841 = vpop.permute.xlu0 %2840
        %2842 = vset.pattern.permute.xlu0 0
        %2843 = vperm.xlu0 %2842, %v2598
        %v2844 = vpop.permute.xlu0 %2843
        %2845 = vset.pattern.permute.xlu0 0
        %2846 = vperm.xlu0 %2845, %v2599
        %v2847 = vpop.permute.xlu0 %2846
        %2848 = vset.pattern.permute.xlu0 0
        %2849 = vperm.xlu0 %2848, %v2600
        %v2850 = vpop.permute.xlu0 %2849
        %2851 = vset.pattern.permute.xlu0 0
        %2852 = vperm.xlu0 %2851, %v2601
        %v2853 = vpop.permute.xlu0 %2852
        %2854 = vset.pattern.permute.xlu0 0
        %2855 = vperm.xlu0 %2854, %v2602
        %v2856 = vpop.permute.xlu0 %2855
        %2857 = vset.pattern.permute.xlu0 0
        %2858 = vperm.xlu0 %2857, %v2603
        %v2859 = vpop.permute.xlu0 %2858
        %v2860 = vlaneseq
        %v2861 = vshrl.u32 %v2860, 7
        %v2862 = vsub.s32 %v1368, %v2861
        %v2863 = vrot.slane %v2670, %v2862
        %v2864 = vlaneseq
        %v2865 = vshrl.u32 %v2864, 7
        %v2866 = vsub.s32 %v1373, %v2865
        %v2867 = vrot.slane %v2673, %v2866
        %v2868 = vsel %vm1378, %v2867, %v2863
        %v2869 = vlaneseq
        %v2870 = vshrl.u32 %v2869, 7
        %v2871 = vsub.s32 %v1380, %v2870
        %v2872 = vrot.slane %v2676, %v2871
        %v2873 = vsel %vm1385, %v2872, %v2868
        %v2874 = vlaneseq
        %v2875 = vshrl.u32 %v2874, 7
        %v2876 = vsub.s32 %v1387, %v2875
        %v2877 = vrot.slane %v2679, %v2876
        %v2878 = vsel %vm1392, %v2877, %v2873
        %v2879 = vlaneseq
        %v2880 = vshrl.u32 %v2879, 7
        %v2881 = vsub.s32 %v1394, %v2880
        %v2882 = vrot.slane %v2682, %v2881
        %v2883 = vsel %vm1399, %v2882, %v2878
        %v2884 = vlaneseq
        %v2885 = vshrl.u32 %v2884, 7
        %v2886 = vsub.s32 %v1401, %v2885
        %v2887 = vrot.slane %v2685, %v2886
        %v2888 = vsel %vm1406, %v2887, %v2883
        %v2889 = vlaneseq
        %v2890 = vshrl.u32 %v2889, 7
        %v2891 = vsub.s32 %v1408, %v2890
        %v2892 = vrot.slane %v2688, %v2891
        %v2893 = vsel %vm1413, %v2892, %v2888
        %v2894 = vlaneseq
        %v2895 = vshrl.u32 %v2894, 7
        %v2896 = vsub.s32 %v1415, %v2895
        %v2897 = vrot.slane %v2691, %v2896
        %v2898 = vsel %vm1420, %v2897, %v2893
        %v2899 = vlaneseq
        %v2900 = vshrl.u32 %v2899, 7
        %v2901 = vsub.s32 %v1422, %v2900
        %v2902 = vrot.slane %v2694, %v2901
        %v2903 = vsel %vm1427, %v2902, %v2898
        %v2904 = vlaneseq
        %v2905 = vshrl.u32 %v2904, 7
        %v2906 = vsub.s32 %v1429, %v2905
        %v2907 = vrot.slane %v2697, %v2906
        %v2908 = vsel %vm1434, %v2907, %v2903
        %v2909 = vlaneseq
        %v2910 = vshrl.u32 %v2909, 7
        %v2911 = vsub.s32 %v1436, %v2910
        %v2912 = vrot.slane %v2700, %v2911
        %v2913 = vsel %vm1441, %v2912, %v2908
        %v2914 = vlaneseq
        %v2915 = vshrl.u32 %v2914, 7
        %v2916 = vsub.s32 %v1443, %v2915
        %v2917 = vrot.slane %v2703, %v2916
        %v2918 = vsel %vm1448, %v2917, %v2913
        %v2919 = vlaneseq
        %v2920 = vshrl.u32 %v2919, 7
        %v2921 = vsub.s32 %v1450, %v2920
        %v2922 = vrot.slane %v2706, %v2921
        %v2923 = vsel %vm1455, %v2922, %v2918
        %v2924 = vlaneseq
        %v2925 = vshrl.u32 %v2924, 7
        %v2926 = vsub.s32 %v1457, %v2925
        %v2927 = vrot.slane %v2709, %v2926
        %v2928 = vsel %vm1462, %v2927, %v2923
        %v2929 = vlaneseq
        %v2930 = vshrl.u32 %v2929, 7
        %v2931 = vsub.s32 %v1464, %v2930
        %v2932 = vrot.slane %v2712, %v2931
        %v2933 = vsel %vm1469, %v2932, %v2928
        %v2934 = vlaneseq
        %v2935 = vshrl.u32 %v2934, 7
        %v2936 = vsub.s32 %v1471, %v2935
        %v2937 = vrot.slane %v2715, %v2936
        %v2938 = vsel %vm1476, %v2937, %v2933
        %v2939 = vlaneseq
        %v2940 = vshrl.u32 %v2939, 7
        %v2941 = vsub.s32 %v1368, %v2940
        %v2942 = vrot.slane %v2718, %v2941
        %v2943 = vlaneseq
        %v2944 = vshrl.u32 %v2943, 7
        %v2945 = vsub.s32 %v1373, %v2944
        %v2946 = vrot.slane %v2721, %v2945
        %v2947 = vsel %vm1378, %v2946, %v2942
        %v2948 = vlaneseq
        %v2949 = vshrl.u32 %v2948, 7
        %v2950 = vsub.s32 %v1380, %v2949
        %v2951 = vrot.slane %v2724, %v2950
        %v2952 = vsel %vm1385, %v2951, %v2947
        %v2953 = vlaneseq
        %v2954 = vshrl.u32 %v2953, 7
        %v2955 = vsub.s32 %v1387, %v2954
        %v2956 = vrot.slane %v2727, %v2955
        %v2957 = vsel %vm1392, %v2956, %v2952
        %v2958 = vlaneseq
        %v2959 = vshrl.u32 %v2958, 7
        %v2960 = vsub.s32 %v1394, %v2959
        %v2961 = vrot.slane %v2730, %v2960
        %v2962 = vsel %vm1399, %v2961, %v2957
        %v2963 = vlaneseq
        %v2964 = vshrl.u32 %v2963, 7
        %v2965 = vsub.s32 %v1401, %v2964
        %v2966 = vrot.slane %v2733, %v2965
        %v2967 = vsel %vm1406, %v2966, %v2962
        %v2968 = vlaneseq
        %v2969 = vshrl.u32 %v2968, 7
        %v2970 = vsub.s32 %v1408, %v2969
        %v2971 = vrot.slane %v2736, %v2970
        %v2972 = vsel %vm1413, %v2971, %v2967
        %v2973 = vlaneseq
        %v2974 = vshrl.u32 %v2973, 7
        %v2975 = vsub.s32 %v1415, %v2974
        %v2976 = vrot.slane %v2739, %v2975
        %v2977 = vsel %vm1420, %v2976, %v2972
        %v2978 = vlaneseq
        %v2979 = vshrl.u32 %v2978, 7
        %v2980 = vsub.s32 %v1422, %v2979
        %v2981 = vrot.slane %v2742, %v2980
        %v2982 = vsel %vm1427, %v2981, %v2977
        %v2983 = vlaneseq
        %v2984 = vshrl.u32 %v2983, 7
        %v2985 = vsub.s32 %v1429, %v2984
        %v2986 = vrot.slane %v2745, %v2985
        %v2987 = vsel %vm1434, %v2986, %v2982
        %v2988 = vlaneseq
        %v2989 = vshrl.u32 %v2988, 7
        %v2990 = vsub.s32 %v1436, %v2989
        %v2991 = vrot.slane %v2748, %v2990
        %v2992 = vsel %vm1441, %v2991, %v2987
        %v2993 = vlaneseq
        %v2994 = vshrl.u32 %v2993, 7
        %v2995 = vsub.s32 %v1443, %v2994
        %v2996 = vrot.slane %v2751, %v2995
        %v2997 = vsel %vm1448, %v2996, %v2992
        %v2998 = vlaneseq
        %v2999 = vshrl.u32 %v2998, 7
        %v3000 = vsub.s32 %v1450, %v2999
        %v3001 = vrot.slane %v2754, %v3000
        %v3002 = vsel %vm1455, %v3001, %v2997
        %v3003 = vlaneseq
        %v3004 = vshrl.u32 %v3003, 7
        %v3005 = vsub.s32 %v1457, %v3004
        %v3006 = vrot.slane %v2757, %v3005
        %v3007 = vsel %vm1462, %v3006, %v3002
        %v3008 = vlaneseq
        %v3009 = vshrl.u32 %v3008, 7
        %v3010 = vsub.s32 %v1464, %v3009
        %v3011 = vrot.slane %v2760, %v3010
        %v3012 = vsel %vm1469, %v3011, %v3007
        %v3013 = vlaneseq
        %v3014 = vshrl.u32 %v3013, 7
        %v3015 = vsub.s32 %v1471, %v3014
        %v3016 = vrot.slane %v2763, %v3015
        %v3017 = vsel %vm1476, %v3016, %v3012
        %v3018 = vlaneseq
        %v3019 = vshrl.u32 %v3018, 7
        %v3020 = vsub.s32 %v1368, %v3019
        %v3021 = vrot.slane %v2766, %v3020
        %v3022 = vlaneseq
        %v3023 = vshrl.u32 %v3022, 7
        %v3024 = vsub.s32 %v1373, %v3023
        %v3025 = vrot.slane %v2769, %v3024
        %v3026 = vsel %vm1378, %v3025, %v3021
        %v3027 = vlaneseq
        %v3028 = vshrl.u32 %v3027, 7
        %v3029 = vsub.s32 %v1380, %v3028
        %v3030 = vrot.slane %v2772, %v3029
        %v3031 = vsel %vm1385, %v3030, %v3026
        %v3032 = vlaneseq
        %v3033 = vshrl.u32 %v3032, 7
        %v3034 = vsub.s32 %v1387, %v3033
        %v3035 = vrot.slane %v2775, %v3034
        %v3036 = vsel %vm1392, %v3035, %v3031
        %v3037 = vlaneseq
        %v3038 = vshrl.u32 %v3037, 7
        %v3039 = vsub.s32 %v1394, %v3038
        %v3040 = vrot.slane %v2778, %v3039
        %v3041 = vsel %vm1399, %v3040, %v3036
        %v3042 = vlaneseq
        %v3043 = vshrl.u32 %v3042, 7
        %v3044 = vsub.s32 %v1401, %v3043
        %v3045 = vrot.slane %v2781, %v3044
        %v3046 = vsel %vm1406, %v3045, %v3041
        %v3047 = vlaneseq
        %v3048 = vshrl.u32 %v3047, 7
        %v3049 = vsub.s32 %v1408, %v3048
        %v3050 = vrot.slane %v2784, %v3049
        %v3051 = vsel %vm1413, %v3050, %v3046
        %v3052 = vlaneseq
        %v3053 = vshrl.u32 %v3052, 7
        %v3054 = vsub.s32 %v1415, %v3053
        %v3055 = vrot.slane %v2787, %v3054
        %v3056 = vsel %vm1420, %v3055, %v3051
        %v3057 = vlaneseq
        %v3058 = vshrl.u32 %v3057, 7
        %v3059 = vsub.s32 %v1422, %v3058
        %v3060 = vrot.slane %v2790, %v3059
        %v3061 = vsel %vm1427, %v3060, %v3056
        %v3062 = vlaneseq
        %v3063 = vshrl.u32 %v3062, 7
        %v3064 = vsub.s32 %v1429, %v3063
        %v3065 = vrot.slane %v2793, %v3064
        %v3066 = vsel %vm1434, %v3065, %v3061
        %v3067 = vlaneseq
        %v3068 = vshrl.u32 %v3067, 7
        %v3069 = vsub.s32 %v1436, %v3068
        %v3070 = vrot.slane %v2796, %v3069
        %v3071 = vsel %vm1441, %v3070, %v3066
        %v3072 = vlaneseq
        %v3073 = vshrl.u32 %v3072, 7
        %v3074 = vsub.s32 %v1443, %v3073
        %v3075 = vrot.slane %v2799, %v3074
        %v3076 = vsel %vm1448, %v3075, %v3071
        %v3077 = vlaneseq
        %v3078 = vshrl.u32 %v3077, 7
        %v3079 = vsub.s32 %v1450, %v3078
        %v3080 = vrot.slane %v2802, %v3079
        %v3081 = vsel %vm1455, %v3080, %v3076
        %v3082 = vlaneseq
        %v3083 = vshrl.u32 %v3082, 7
        %v3084 = vsub.s32 %v1457, %v3083
        %v3085 = vrot.slane %v2805, %v3084
        %v3086 = vsel %vm1462, %v3085, %v3081
        %v3087 = vlaneseq
        %v3088 = vshrl.u32 %v3087, 7
        %v3089 = vsub.s32 %v1464, %v3088
        %v3090 = vrot.slane %v2808, %v3089
        %v3091 = vsel %vm1469, %v3090, %v3086
        %v3092 = vlaneseq
        %v3093 = vshrl.u32 %v3092, 7
        %v3094 = vsub.s32 %v1471, %v3093
        %v3095 = vrot.slane %v2811, %v3094
        %v3096 = vsel %vm1476, %v3095, %v3091
        %v3097 = vlaneseq
        %v3098 = vshrl.u32 %v3097, 7
        %v3099 = vsub.s32 %v1368, %v3098
        %v3100 = vrot.slane %v2814, %v3099
        %v3101 = vlaneseq
        %v3102 = vshrl.u32 %v3101, 7
        %v3103 = vsub.s32 %v1373, %v3102
        %v3104 = vrot.slane %v2817, %v3103
        %v3105 = vsel %vm1378, %v3104, %v3100
        %v3106 = vlaneseq
        %v3107 = vshrl.u32 %v3106, 7
        %v3108 = vsub.s32 %v1380, %v3107
        %v3109 = vrot.slane %v2820, %v3108
        %v3110 = vsel %vm1385, %v3109, %v3105
        %v3111 = vlaneseq
        %v3112 = vshrl.u32 %v3111, 7
        %v3113 = vsub.s32 %v1387, %v3112
        %v3114 = vrot.slane %v2823, %v3113
        %v3115 = vsel %vm1392, %v3114, %v3110
        %v3116 = vlaneseq
        %v3117 = vshrl.u32 %v3116, 7
        %v3118 = vsub.s32 %v1394, %v3117
        %v3119 = vrot.slane %v2826, %v3118
        %v3120 = vsel %vm1399, %v3119, %v3115
        %v3121 = vlaneseq
        %v3122 = vshrl.u32 %v3121, 7
        %v3123 = vsub.s32 %v1401, %v3122
        %v3124 = vrot.slane %v2829, %v3123
        %v3125 = vsel %vm1406, %v3124, %v3120
        %v3126 = vlaneseq
        %v3127 = vshrl.u32 %v3126, 7
        %v3128 = vsub.s32 %v1408, %v3127
        %v3129 = vrot.slane %v2832, %v3128
        %v3130 = vsel %vm1413, %v3129, %v3125
        %v3131 = vlaneseq
        %v3132 = vshrl.u32 %v3131, 7
        %v3133 = vsub.s32 %v1415, %v3132
        %v3134 = vrot.slane %v2835, %v3133
        %v3135 = vsel %vm1420, %v3134, %v3130
        %v3136 = vlaneseq
        %v3137 = vshrl.u32 %v3136, 7
        %v3138 = vsub.s32 %v1422, %v3137
        %v3139 = vrot.slane %v2838, %v3138
        %v3140 = vsel %vm1427, %v3139, %v3135
        %v3141 = vlaneseq
        %v3142 = vshrl.u32 %v3141, 7
        %v3143 = vsub.s32 %v1429, %v3142
        %v3144 = vrot.slane %v2841, %v3143
        %v3145 = vsel %vm1434, %v3144, %v3140
        %v3146 = vlaneseq
        %v3147 = vshrl.u32 %v3146, 7
        %v3148 = vsub.s32 %v1436, %v3147
        %v3149 = vrot.slane %v2844, %v3148
        %v3150 = vsel %vm1441, %v3149, %v3145
        %v3151 = vlaneseq
        %v3152 = vshrl.u32 %v3151, 7
        %v3153 = vsub.s32 %v1443, %v3152
        %v3154 = vrot.slane %v2847, %v3153
        %v3155 = vsel %vm1448, %v3154, %v3150
        %v3156 = vlaneseq
        %v3157 = vshrl.u32 %v3156, 7
        %v3158 = vsub.s32 %v1450, %v3157
        %v3159 = vrot.slane %v2850, %v3158
        %v3160 = vsel %vm1455, %v3159, %v3155
        %v3161 = vlaneseq
        %v3162 = vshrl.u32 %v3161, 7
        %v3163 = vsub.s32 %v1457, %v3162
        %v3164 = vrot.slane %v2853, %v3163
        %v3165 = vsel %vm1462, %v3164, %v3160
        %v3166 = vlaneseq
        %v3167 = vshrl.u32 %v3166, 7
        %v3168 = vsub.s32 %v1464, %v3167
        %v3169 = vrot.slane %v2856, %v3168
        %v3170 = vsel %vm1469, %v3169, %v3165
        %v3171 = vlaneseq
        %v3172 = vshrl.u32 %v3171, 7
        %v3173 = vsub.s32 %v1471, %v3172
        %v3174 = vrot.slane %v2859, %v3173
        %v3175 = vsel %vm1476, %v3174, %v3170
        %3180 = vst [vmem:[%s339] sm:$0x1] %v2938
        %3181 = vst [vmem:[%s339 + $0x1] sm:$0x1] %v3017
        %3182 = vst [vmem:[%s339 + $0x2] sm:$0x1] %v3096
        %3183 = vst [vmem:[%s339 + $0x3] sm:$0x1] %v3175
        %s3184 = sand.u32 %s171, 1
        %s3185 = scalar_lea.sflag [#allocation4], %s3184
        %s3186 = sand.u32 %s171, 1
        %s3187 = smul.addr %s3186, 4
        %s3188 = scalar_lea.vmem [#allocation10], %s3187
        // Predicated region
        $region61: #{tpu_custom_call.1} parent=43 // pred_check
          %p3189 = pneg %p181
        $region62: #{tpu_custom_call.1} parent=43 // pred_check_branch
          %3191 = sbr.rel (%p3189) target = $region64
        $region63: #{tpu_custom_call.1} parent=43 // pred_region
          %s3192 = smul.u32 4, %s27
          %s3194 = ssub.s32 64, 64
          %3195 = vsyncadd %s3185, %s3194
          %s3196 = smul.addr %s3192, 16
          %s3197 = scalar_lea.hbm %s6, %s3196
          %s3198 = sshll.u32 %s3188, 4
          %s3199 = int_to_ptr.vmem [resolvable:$true] %s3198
          %3204 = dma.vmem_to_hbm [thread:$0]  %s3199, 64, %s3197, %s3185, 16, 16, 1
        $region64: #{tpu_custom_call.1} parent=43 // pred_fallthru
          _
      $region44: #{tpu_custom_call.1} parent=5 // pred_fallthru
        _
      %p3205 = scmp.le.s32.totalorder 2, %s22
      // Predicated region
      $region65: #{tpu_custom_call.1} parent=5 // pred_check
        %p3206 = pneg %p3205
      $region66: #{tpu_custom_call.1} parent=5 // pred_check_branch
        %3208 = sbr.rel (%p3206) target = $region68
      $region67: #{tpu_custom_call.1} parent=5 // pred_region
        %s3209 = ssub.s32 %s22, 2
        // Predicated region
        $region69: #{tpu_custom_call.1} parent=67 // pred_check
          %p3210 = pneg %p187
        $region70: #{tpu_custom_call.1} parent=67 // pred_check_branch
          %3212 = sbr.rel (%p3210) target = $region72
        $region71: #{tpu_custom_call.1} parent=67 // pred_region
          %s3213 = sand.u32 %s172, 1
          %s3214 = scalar_lea.sflag [#allocation4], %s3213
          %s3215 = sand.u32 %s172, 1
          %s3216 = smul.addr %s3215, 4
          %s3217 = scalar_lea.vmem [#allocation10], %s3216
          %3218 = dma.done %s3214, 64
        $region72: #{tpu_custom_call.1} parent=67 // pred_fallthru
          _
      $region68: #{tpu_custom_call.1} parent=5 // pred_fallthru
        _
    $region6: #{tpu_custom_call.1} parent=1 // loop_footer
      %s26 = sadd.s32 1, %s22
    $region7: #{tpu_custom_call.1} parent=1 // loop_footer_branch
      %21 = sbr.rel target = $region3
    $region8: #{tpu_custom_call.1} parent=1 // loop_exit
      _
    %3219 = vsyncpa [#allocation3], 1
    %s3220 = scalar_lea.sflag [#allocation3], 1
    %3221 = vsyncpa %s3220, 1
    %3222 = vsyncpa [#allocation6], 1
    %s3223 = scalar_lea.sflag [#allocation6], 1
    %3224 = vsyncpa %s3223, 1
    %3225 = vsyncpa [#allocation9], 1
    %3226 = vsyncpa [#allocation4], 1
    %s3227 = scalar_lea.sflag [#allocation4], 1
    %3228 = vsyncpa %s3227, 1

</llo_original>
